<compile_context>
chip_gen: v7x
topology: tpu7x:2x2x1
jax: 0.10.0
libtpu: 0.0.40
codegen_flags: <defaults>
</compile_context>

<pallas_src>
import functools

import jax
import jax.numpy as jnp
from jax.experimental import pallas as pl
from jax.experimental.pallas import tpu as pltpu


# ---------------------------------------------------------------------------
# Kernel
# ---------------------------------------------------------------------------
def encoder4_kernel(x_ref, w1_ref, b1_ref, w2_ref, b2_ref, w3_ref, b3_ref,
                    w4_ref, b4_ref, wh_ref, bh_ref, eps_ref, out_ref):
    f32 = jnp.float32
    cdt = w1_ref.dtype          # compute dtype of the weights (bf16)
    feats = eps_ref.shape[-1]

    # enc1 .. enc4 with relu. x arrives as f32 straight from HBM; cast to the
    # MXU compute dtype in-register. Accumulation / bias / relu stay f32.
    h = jnp.dot(x_ref[...].astype(cdt), w1_ref[...],
                preferred_element_type=f32) + b1_ref[...]
    h = jnp.maximum(h, 0.0)
    h = jnp.dot(h.astype(cdt), w2_ref[...], preferred_element_type=f32) + b2_ref[...]
    h = jnp.maximum(h, 0.0)
    h = jnp.dot(h.astype(cdt), w3_ref[...], preferred_element_type=f32) + b3_ref[...]
    h = jnp.maximum(h, 0.0)
    h = jnp.dot(h.astype(cdt), w4_ref[...], preferred_element_type=f32) + b4_ref[...]
    h = jnp.maximum(h, 0.0)

    # Fused heads: enc5 folded into [Wmu | Wlv]  ->  one (TB, 2F) matmul.
    heads = jnp.dot(h.astype(cdt), wh_ref[...],
                    preferred_element_type=f32) + bh_ref[...]
    mu = heads[:, :feats]
    lv = heads[:, feats:]

    # reparameterize: eps (1, F) broadcast across batch (torch.randn(features)).
    enc = eps_ref[...] * jnp.exp(0.5 * lv) + mu

    # Lane-packed output slab [mu | logvar | enc] via direct sub-range stores
    # (no in-kernel concatenate / extra VMEM materialization).
    out_ref[:, :2 * feats] = heads
    out_ref[:, 2 * feats:] = enc


# ---------------------------------------------------------------------------
# Parameter init (nn.Linear layout, stored transposed as (in, out)) and packing
# ---------------------------------------------------------------------------
def init_params(key, neurons, features):
    ks = jax.random.split(key, 14)

    def linear(kw, kb, fan_in, fan_out):
        bound = 1.0 / jnp.sqrt(fan_in)
        w = jax.random.uniform(kw, (fan_in, fan_out), jnp.float32, -bound, bound)
        b = jax.random.uniform(kb, (1, fan_out), jnp.float32, -bound, bound)
        return w, b

    w1, b1 = linear(ks[0], ks[1], 784, neurons)
    w2, b2 = linear(ks[2], ks[3], neurons, neurons)
    w3, b3 = linear(ks[4], ks[5], neurons, neurons)
    w4, b4 = linear(ks[6], ks[7], neurons, neurons)
    w5, b5 = linear(ks[8], ks[9], neurons, features)
    wmu, bmu = linear(ks[10], ks[11], features, features)
    wlv, blv = linear(ks[12], ks[13], features, features)
    return dict(w1=w1, b1=b1, w2=w2, b2=b2, w3=w3, b3=b3, w4=w4, b4=b4,
                w5=w5, b5=b5, wmu=wmu, bmu=bmu, wlv=wlv, blv=blv)


def pack_params(params, compute_dtype=jnp.bfloat16):
    """Fold enc5 into the heads, fuse mu|logvar, cast weights for the MXU."""
    # Fold in f32 for accuracy, then cast weights (biases stay f32).
    wcat = jnp.concatenate([params["wmu"], params["wlv"]], axis=1)   # (F, 2F)
    bcat = jnp.concatenate([params["bmu"], params["blv"]], axis=1)   # (1, 2F)
    whead = params["w5"] @ wcat                                      # (N, 2F)
    bhead = params["b5"] @ wcat + bcat                               # (1, 2F)

    return dict(
        w1=params["w1"].astype(compute_dtype), b1=params["b1"],
        w2=params["w2"].astype(compute_dtype), b2=params["b2"],
        w3=params["w3"].astype(compute_dtype), b3=params["b3"],
        w4=params["w4"].astype(compute_dtype), b4=params["b4"],
        whead=whead.astype(compute_dtype), bhead=bhead,
    )


# ---------------------------------------------------------------------------
# Wrapper
# ---------------------------------------------------------------------------
@functools.partial(jax.jit, static_argnames=("block_b",))
def encoder4_forward(x, packed, eps, *, block_b=1024):
    """x: (B, 784) f32; packed: output of pack_params; eps: (1, features) f32."""
    B, k_in = x.shape
    feats = eps.shape[-1]

    # Batch tile choice:
    #  * default 1024 rows (amortizes per-grid-step pipeline overhead; a
    #    double-buffered f32 (1024, 784) x block is ~6 MiB, safe under v5e's
    #    16 MiB default scoped VMEM),
    #  * >= 2 grid steps when B allows it, so both v7x TensorCores get work,
    #  * sublane-multiple (8) block rows unless the block is the full batch.
    tb = min(block_b, B)
    if B >= 16:
        tb = min(tb, (B // 2) // 8 * 8)
    if tb != B:
        tb = max(8, tb // 8 * 8)
    nb = pl.cdiv(B, tb)   # ragged last block handled by Pallas; no wrapper pad.

    def resident(a):  # weights / biases / eps: same block every grid step
        return pl.BlockSpec(a.shape, lambda i, _nd=a.ndim: (0,) * _nd)

    inputs = [
        x,
        packed["w1"], packed["b1"],
        packed["w2"], packed["b2"],
        packed["w3"], packed["b3"],
        packed["w4"], packed["b4"],
        packed["whead"], packed["bhead"],
        eps,
    ]
    in_specs = [pl.BlockSpec((tb, k_in), lambda i: (i, 0))] + \
               [resident(a) for a in inputs[1:]]

    out = pl.pallas_call(
        encoder4_kernel,
        grid=(nb,),
        in_specs=in_specs,
        out_specs=pl.BlockSpec((tb, 3 * feats), lambda i: (i, 0)),
        out_shape=jax.ShapeDtypeStruct((B, 3 * feats), jnp.float32),
        compiler_params=pltpu.CompilerParams(
            dimension_semantics=("parallel",)),
    )(*inputs)

    mu = out[:, :feats]
    log_var = out[:, feats:2 * feats]
    encoding = out[:, 2 * feats:]
    return mu, log_var, encoding


# ---------------------------------------------------------------------------
# Demo / correctness check
# ---------------------------------------------------------------------------
if __name__ == "__main__":
    key = jax.random.PRNGKey(0)
    k_x, k_p, k_eps = jax.random.split(key, 3)

    batch = 64
    neurons = 32
    features = 16

    x = jax.random.normal(k_x, (batch, 784), jnp.float32)
    params = init_params(k_p, neurons, features)
    # torch.randn(self.features): one noise vector shared across the batch.
    # TODO(synk): torch.randn is host-side RNG; supplied here as an explicit eps input.
    eps = jax.random.normal(k_eps, (1, features), jnp.float32)

    packed = pack_params(params, compute_dtype=jnp.bfloat16)
    mu, log_var, encoding = encoder4_forward(x, packed, eps)
    jax.block_until_ready((mu, log_var, encoding))

    # Reference: plain f32 JAX with the *unfolded* Encoder4 math.
    def ref(x):
        h = jnp.maximum(x @ params["w1"] + params["b1"], 0.0)
        h = jnp.maximum(h @ params["w2"] + params["b2"], 0.0)
        h = jnp.maximum(h @ params["w3"] + params["b3"], 0.0)
        h = jnp.maximum(h @ params["w4"] + params["b4"], 0.0)
        h = h @ params["w5"] + params["b5"]
        mu_r = h @ params["wmu"] + params["bmu"]
        lv_r = h @ params["wlv"] + params["blv"]
        enc_r = eps * jnp.exp(0.5 * lv_r) + mu_r
        return mu_r, lv_r, enc_r

    mu_r, lv_r, enc_r = ref(x)
    # Tolerances account for bf16 weights/activations in the kernel (f32 accumulate).
    tol = dict(atol=5e-2, rtol=5e-2)
    assert jnp.allclose(mu, mu_r, **tol)
    assert jnp.allclose(log_var, lv_r, **tol)
    assert jnp.allclose(encoding, enc_r, **tol)

    print("KERNEL_OK")
</pallas_src>

<mosaic_0001>
module attributes {stable_mosaic.version = 11 : i64} {
  func.func @encoder4_kernel(%arg0: i32, %arg1: memref<32x784xf32, #tpu.memory_space<vmem>>, %arg2: memref<784x32xbf16, #tpu.memory_space<vmem>>, %arg3: memref<1x32xf32, #tpu.memory_space<vmem>>, %arg4: memref<32x32xbf16, #tpu.memory_space<vmem>>, %arg5: memref<1x32xf32, #tpu.memory_space<vmem>>, %arg6: memref<32x32xbf16, #tpu.memory_space<vmem>>, %arg7: memref<1x32xf32, #tpu.memory_space<vmem>>, %arg8: memref<32x32xbf16, #tpu.memory_space<vmem>>, %arg9: memref<1x32xf32, #tpu.memory_space<vmem>>, %arg10: memref<32x32xbf16, #tpu.memory_space<vmem>>, %arg11: memref<1x32xf32, #tpu.memory_space<vmem>>, %arg12: memref<1x16xf32, #tpu.memory_space<vmem>>, %arg13: memref<32x48xf32, #tpu.memory_space<vmem>>) attributes {dimension_semantics = [#tpu.dimension_semantics<parallel>], iteration_bounds = array<i64: 2>, scalar_prefetch = 0 : i64, scratch_operands = 0 : i64, tpu.core_type = #tpu.core_type<tc>, window_params = [{transform_indices = @transform_0, window_bounds = array<i64: 32, 784>}, {pipeline_mode = #tpu.pipeline_mode<synchronous>, transform_indices = @transform_1, window_bounds = array<i64: 784, 32>}, {pipeline_mode = #tpu.pipeline_mode<synchronous>, transform_indices = @transform_2, window_bounds = array<i64: 1, 32>}, {pipeline_mode = #tpu.pipeline_mode<synchronous>, transform_indices = @transform_3, window_bounds = array<i64: 32, 32>}, {pipeline_mode = #tpu.pipeline_mode<synchronous>, transform_indices = @transform_4, window_bounds = array<i64: 1, 32>}, {pipeline_mode = #tpu.pipeline_mode<synchronous>, transform_indices = @transform_5, window_bounds = array<i64: 32, 32>}, {pipeline_mode = #tpu.pipeline_mode<synchronous>, transform_indices = @transform_6, window_bounds = array<i64: 1, 32>}, {pipeline_mode = #tpu.pipeline_mode<synchronous>, transform_indices = @transform_7, window_bounds = array<i64: 32, 32>}, {pipeline_mode = #tpu.pipeline_mode<synchronous>, transform_indices = @transform_8, window_bounds = array<i64: 1, 32>}, {pipeline_mode = #tpu.pipeline_mode<synchronous>, transform_indices = @transform_9, window_bounds = array<i64: 32, 32>}, {pipeline_mode = #tpu.pipeline_mode<synchronous>, transform_indices = @transform_10, window_bounds = array<i64: 1, 32>}, {pipeline_mode = #tpu.pipeline_mode<synchronous>, transform_indices = @transform_11, window_bounds = array<i64: 1, 16>}, {transform_indices = @transform_12, window_bounds = array<i64: 32, 48>}]} {
    %c0 = arith.constant 0 : index
    %c0_0 = arith.constant 0 : index
    %0 = vector.load %arg1[%c0, %c0_0] : memref<32x784xf32, #tpu.memory_space<vmem>>, vector<32x784xf32>
    %1 = arith.truncf %0 : vector<32x784xf32> to vector<32x784xbf16>
    %c0_1 = arith.constant 0 : index
    %c0_2 = arith.constant 0 : index
    %2 = vector.load %arg2[%c0_1, %c0_2] : memref<784x32xbf16, #tpu.memory_space<vmem>>, vector<784x32xbf16>
    %cst = arith.constant dense<0.000000e+00> : vector<32x32xf32>
    %3 = tpu.matmul %1, %2, %cst {dimension_numbers = #tpu.dot_dimension_numbers<[1], [0], [0], [1], [0, 0, 1, 1], [], []>} : vector<32x784xbf16>, vector<784x32xbf16>, vector<32x32xf32> -> vector<32x32xf32>
    %c0_3 = arith.constant 0 : index
    %c0_4 = arith.constant 0 : index
    %4 = vector.load %arg3[%c0_3, %c0_4] : memref<1x32xf32, #tpu.memory_space<vmem>>, vector<1x32xf32>
    %5 = vector.broadcast %4 : vector<1x32xf32> to vector<32x32xf32>
    %6 = arith.addf %3, %5 : vector<32x32xf32>
    %cst_5 = arith.constant 0.000000e+00 : f32
    %7 = vector.broadcast %cst_5 : f32 to vector<32x32xf32>
    %8 = arith.maximumf %6, %7 : vector<32x32xf32>
    %9 = arith.truncf %8 : vector<32x32xf32> to vector<32x32xbf16>
    %c0_6 = arith.constant 0 : index
    %c0_7 = arith.constant 0 : index
    %10 = vector.load %arg4[%c0_6, %c0_7] : memref<32x32xbf16, #tpu.memory_space<vmem>>, vector<32x32xbf16>
    %cst_8 = arith.constant dense<0.000000e+00> : vector<32x32xf32>
    %11 = tpu.matmul %9, %10, %cst_8 {dimension_numbers = #tpu.dot_dimension_numbers<[1], [0], [0], [1], [0, 0, 1, 1], [], []>} : vector<32x32xbf16>, vector<32x32xbf16>, vector<32x32xf32> -> vector<32x32xf32>
    %c0_9 = arith.constant 0 : index
    %c0_10 = arith.constant 0 : index
    %12 = vector.load %arg5[%c0_9, %c0_10] : memref<1x32xf32, #tpu.memory_space<vmem>>, vector<1x32xf32>
    %13 = vector.broadcast %12 : vector<1x32xf32> to vector<32x32xf32>
    %14 = arith.addf %11, %13 : vector<32x32xf32>
    %cst_11 = arith.constant 0.000000e+00 : f32
    %15 = vector.broadcast %cst_11 : f32 to vector<32x32xf32>
    %16 = arith.maximumf %14, %15 : vector<32x32xf32>
    %17 = arith.truncf %16 : vector<32x32xf32> to vector<32x32xbf16>
    %c0_12 = arith.constant 0 : index
    %c0_13 = arith.constant 0 : index
    %18 = vector.load %arg6[%c0_12, %c0_13] : memref<32x32xbf16, #tpu.memory_space<vmem>>, vector<32x32xbf16>
    %cst_14 = arith.constant dense<0.000000e+00> : vector<32x32xf32>
    %19 = tpu.matmul %17, %18, %cst_14 {dimension_numbers = #tpu.dot_dimension_numbers<[1], [0], [0], [1], [0, 0, 1, 1], [], []>} : vector<32x32xbf16>, vector<32x32xbf16>, vector<32x32xf32> -> vector<32x32xf32>
    %c0_15 = arith.constant 0 : index
    %c0_16 = arith.constant 0 : index
    %20 = vector.load %arg7[%c0_15, %c0_16] : memref<1x32xf32, #tpu.memory_space<vmem>>, vector<1x32xf32>
    %21 = vector.broadcast %20 : vector<1x32xf32> to vector<32x32xf32>
    %22 = arith.addf %19, %21 : vector<32x32xf32>
    %cst_17 = arith.constant 0.000000e+00 : f32
    %23 = vector.broadcast %cst_17 : f32 to vector<32x32xf32>
    %24 = arith.maximumf %22, %23 : vector<32x32xf32>
    %25 = arith.truncf %24 : vector<32x32xf32> to vector<32x32xbf16>
    %c0_18 = arith.constant 0 : index
    %c0_19 = arith.constant 0 : index
    %26 = vector.load %arg8[%c0_18, %c0_19] : memref<32x32xbf16, #tpu.memory_space<vmem>>, vector<32x32xbf16>
    %cst_20 = arith.constant dense<0.000000e+00> : vector<32x32xf32>
    %27 = tpu.matmul %25, %26, %cst_20 {dimension_numbers = #tpu.dot_dimension_numbers<[1], [0], [0], [1], [0, 0, 1, 1], [], []>} : vector<32x32xbf16>, vector<32x32xbf16>, vector<32x32xf32> -> vector<32x32xf32>
    %c0_21 = arith.constant 0 : index
    %c0_22 = arith.constant 0 : index
    %28 = vector.load %arg9[%c0_21, %c0_22] : memref<1x32xf32, #tpu.memory_space<vmem>>, vector<1x32xf32>
    %29 = vector.broadcast %28 : vector<1x32xf32> to vector<32x32xf32>
    %30 = arith.addf %27, %29 : vector<32x32xf32>
    %cst_23 = arith.constant 0.000000e+00 : f32
    %31 = vector.broadcast %cst_23 : f32 to vector<32x32xf32>
    %32 = arith.maximumf %30, %31 : vector<32x32xf32>
    %33 = arith.truncf %32 : vector<32x32xf32> to vector<32x32xbf16>
    %c0_24 = arith.constant 0 : index
    %c0_25 = arith.constant 0 : index
    %34 = vector.load %arg10[%c0_24, %c0_25] : memref<32x32xbf16, #tpu.memory_space<vmem>>, vector<32x32xbf16>
    %cst_26 = arith.constant dense<0.000000e+00> : vector<32x32xf32>
    %35 = tpu.matmul %33, %34, %cst_26 {dimension_numbers = #tpu.dot_dimension_numbers<[1], [0], [0], [1], [0, 0, 1, 1], [], []>} : vector<32x32xbf16>, vector<32x32xbf16>, vector<32x32xf32> -> vector<32x32xf32>
    %c0_27 = arith.constant 0 : index
    %c0_28 = arith.constant 0 : index
    %36 = vector.load %arg11[%c0_27, %c0_28] : memref<1x32xf32, #tpu.memory_space<vmem>>, vector<1x32xf32>
    %37 = vector.broadcast %36 : vector<1x32xf32> to vector<32x32xf32>
    %38 = arith.addf %35, %37 : vector<32x32xf32>
    %39 = vector.extract_strided_slice %38 {offsets = [0, 0], sizes = [32, 16], strides = [1, 1]} : vector<32x32xf32> to vector<32x16xf32>
    %40 = vector.extract_strided_slice %38 {offsets = [0, 16], sizes = [32, 16], strides = [1, 1]} : vector<32x32xf32> to vector<32x16xf32>
    %c0_29 = arith.constant 0 : index
    %c0_30 = arith.constant 0 : index
    %41 = vector.load %arg12[%c0_29, %c0_30] : memref<1x16xf32, #tpu.memory_space<vmem>>, vector<1x16xf32>
    %cst_31 = arith.constant 5.000000e-01 : f32
    %42 = vector.broadcast %cst_31 : f32 to vector<32x16xf32>
    %43 = arith.mulf %42, %40 : vector<32x16xf32>
    %44 = math.exp %43 : vector<32x16xf32>
    %45 = vector.broadcast %41 : vector<1x16xf32> to vector<32x16xf32>
    %46 = arith.mulf %45, %44 : vector<32x16xf32>
    %47 = arith.addf %46, %39 : vector<32x16xf32>
    %c0_32 = arith.constant 0 : index
    %c0_33 = arith.constant 0 : index
    %48 = vector.load %arg13[%c0_32, %c0_33] : memref<32x48xf32, #tpu.memory_space<vmem>>, vector<32x32xf32>
    tpu.vector_store %arg13[%c0_32, %c0_33], %38 {strides = array<i32>} : memref<32x48xf32, #tpu.memory_space<vmem>>, vector<32x32xf32>,
    %c0_34 = arith.constant 0 : index
    %c32 = arith.constant 32 : index
    %49 = vector.load %arg13[%c0_34, %c32] : memref<32x48xf32, #tpu.memory_space<vmem>>, vector<32x16xf32>
    tpu.vector_store %arg13[%c0_34, %c32], %47 {strides = array<i32>} : memref<32x48xf32, #tpu.memory_space<vmem>>, vector<32x16xf32>,
    return
  }
  func.func @transform_0(%arg0: i32) -> (i32, i32) {
    %c0_i32 = arith.constant 0 : i32
    %c0_i32_0 = arith.constant 0 : i32
    return %arg0, %c0_i32 : i32, i32
  }
  func.func @transform_1(%arg0: i32) -> (i32, i32) {
    %c0_i32 = arith.constant 0 : i32
    %c0_i32_0 = arith.constant 0 : i32
    %c0_i32_1 = arith.constant 0 : i32
    return %c0_i32, %c0_i32_0 : i32, i32
  }
  func.func @transform_2(%arg0: i32) -> (i32, i32) {
    %c0_i32 = arith.constant 0 : i32
    %c0_i32_0 = arith.constant 0 : i32
    %c0_i32_1 = arith.constant 0 : i32
    return %c0_i32, %c0_i32_0 : i32, i32
  }
  func.func @transform_3(%arg0: i32) -> (i32, i32) {
    %c0_i32 = arith.constant 0 : i32
    %c0_i32_0 = arith.constant 0 : i32
    %c0_i32_1 = arith.constant 0 : i32
    return %c0_i32, %c0_i32_0 : i32, i32
  }
  func.func @transform_4(%arg0: i32) -> (i32, i32) {
    %c0_i32 = arith.constant 0 : i32
    %c0_i32_0 = arith.constant 0 : i32
    %c0_i32_1 = arith.constant 0 : i32
    return %c0_i32, %c0_i32_0 : i32, i32
  }
  func.func @transform_5(%arg0: i32) -> (i32, i32) {
    %c0_i32 = arith.constant 0 : i32
    %c0_i32_0 = arith.constant 0 : i32
    %c0_i32_1 = arith.constant 0 : i32
    return %c0_i32, %c0_i32_0 : i32, i32
  }
  func.func @transform_6(%arg0: i32) -> (i32, i32) {
    %c0_i32 = arith.constant 0 : i32
    %c0_i32_0 = arith.constant 0 : i32
    %c0_i32_1 = arith.constant 0 : i32
    return %c0_i32, %c0_i32_0 : i32, i32
  }
  func.func @transform_7(%arg0: i32) -> (i32, i32) {
    %c0_i32 = arith.constant 0 : i32
    %c0_i32_0 = arith.constant 0 : i32
    %c0_i32_1 = arith.constant 0 : i32
    return %c0_i32, %c0_i32_0 : i32, i32
  }
  func.func @transform_8(%arg0: i32) -> (i32, i32) {
    %c0_i32 = arith.constant 0 : i32
    %c0_i32_0 = arith.constant 0 : i32
    %c0_i32_1 = arith.constant 0 : i32
    return %c0_i32, %c0_i32_0 : i32, i32
  }
  func.func @transform_9(%arg0: i32) -> (i32, i32) {
    %c0_i32 = arith.constant 0 : i32
    %c0_i32_0 = arith.constant 0 : i32
    %c0_i32_1 = arith.constant 0 : i32
    return %c0_i32, %c0_i32_0 : i32, i32
  }
  func.func @transform_10(%arg0: i32) -> (i32, i32) {
    %c0_i32 = arith.constant 0 : i32
    %c0_i32_0 = arith.constant 0 : i32
    %c0_i32_1 = arith.constant 0 : i32
    return %c0_i32, %c0_i32_0 : i32, i32
  }
  func.func @transform_11(%arg0: i32) -> (i32, i32) {
    %c0_i32 = arith.constant 0 : i32
    %c0_i32_0 = arith.constant 0 : i32
    %c0_i32_1 = arith.constant 0 : i32
    return %c0_i32, %c0_i32_0 : i32, i32
  }
  func.func @transform_12(%arg0: i32) -> (i32, i32) {
    %c0_i32 = arith.constant 0 : i32
    %c0_i32_0 = arith.constant 0 : i32
    return %arg0, %c0_i32 : i32, i32
  }
}

</mosaic_0001>

<llo_original>
// kernel: encoder4_forward.1
$region0: #{encoder4_forward.1}
  #allocation0 [shape = 'u32[]', space=smem, size = 0x4, offset = 0x4, fixed_abs, tag = 'smem constant byte address 0x4 - core index']
  #allocation1 [shape = 'u32[144,128]{1,0:T(1,128)}', space=vmem, size = 0x12000, scoped, tag = 'internal scratch']
  %s0 = inlined_call_operand.vmem [shape: f32[64,784], index: 0, kind: input, shape index: {}]
  %s1 = inlined_call_operand.vmem [shape: bf16[784,32], index: 1, kind: input, shape index: {}]
  %s2 = inlined_call_operand.vmem [shape: f32[1,32], index: 2, kind: input, shape index: {}]
  %s3 = inlined_call_operand.vmem [shape: bf16[32,32], index: 3, kind: input, shape index: {}]
  %s4 = inlined_call_operand.vmem [shape: f32[1,32], index: 4, kind: input, shape index: {}]
  %s5 = inlined_call_operand.vmem [shape: bf16[32,32], index: 5, kind: input, shape index: {}]
  %s6 = inlined_call_operand.vmem [shape: f32[1,32], index: 6, kind: input, shape index: {}]
  %s7 = inlined_call_operand.vmem [shape: bf16[32,32], index: 7, kind: input, shape index: {}]
  %s8 = inlined_call_operand.vmem [shape: f32[1,32], index: 8, kind: input, shape index: {}]
  %s9 = inlined_call_operand.vmem [shape: bf16[32,32], index: 9, kind: input, shape index: {}]
  %s10 = inlined_call_operand.vmem [shape: f32[1,32], index: 10, kind: input, shape index: {}]
  %s11 = inlined_call_operand.vmem [shape: f32[1,16], index: 11, kind: input, shape index: {}]
  %s12 = inlined_call_operand.vmem [shape: f32[64,48], index: 12, kind: output, shape index: {}]
  %s13 = sld [smem:[#allocation0]]
  $region81: #{encoder4_forward.1} parent=0
    _
  %s15 = ssub.s32 1, %s13
  %s16 = scalar_select 0, %s15, %s13
  loop: start=0, step=1, limit=4
  $region2: #{encoder4_forward.1} parent=0 // loop_pre_header
    _
  $region3: #{encoder4_forward.1} parent=0 // loop_header
    %s18 = sphi 0, %s22
    %p19 = scmp.ge.s32.totalorder %s18, 4
    %s28 = sphi 0, %s30
    %s31 = sphi 0, %s28
    %s32 = sphi 0, %s31
    %s48 = sphi 0, %s32
    %s52 = sphi 0, %s52
    %s54 = sphi 0, %s52
    %s55 = sphi 0, %s54
    %s69 = sphi 0, %s55
    %s73 = sphi 0, %s73
    %s75 = sphi 0, %s73
    %s76 = sphi 0, %s75
    %s90 = sphi 0, %s76
    %s94 = sphi 0, %s94
    %s96 = sphi 0, %s94
    %s97 = sphi 0, %s96
    %s111 = sphi 0, %s97
    %s115 = sphi 0, %s115
    %s117 = sphi 0, %s115
    %s118 = sphi 0, %s117
    %s132 = sphi 0, %s118
    %s136 = sphi 0, %s136
    %s138 = sphi 0, %s136
    %s139 = sphi 0, %s138
    %s153 = sphi 0, %s139
    %s157 = sphi 0, %s157
    %s159 = sphi 0, %s157
    %s160 = sphi 0, %s159
    %s174 = sphi 0, %s160
    %s178 = sphi 0, %s178
    %s180 = sphi 0, %s178
    %s181 = sphi 0, %s180
    %s195 = sphi 0, %s181
    %s199 = sphi 0, %s199
    %s201 = sphi 0, %s199
    %s202 = sphi 0, %s201
    %s216 = sphi 0, %s202
    %s220 = sphi 0, %s220
    %s222 = sphi 0, %s220
    %s223 = sphi 0, %s222
    %s237 = sphi 0, %s223
    %s241 = sphi 0, %s241
    %s243 = sphi 0, %s241
    %s244 = sphi 0, %s243
    %s258 = sphi 0, %s244
    %s262 = sphi 0, %s262
    %s264 = sphi 0, %s262
    %s265 = sphi 0, %s264
    %s279 = sphi 0, %s265
    %s285 = sphi 0, %s287
    %s288 = sphi 0, %s285
    %s289 = sphi 0, %s288
    %s305 = sphi 0, %s289
  $region4: #{encoder4_forward.1} parent=0 // loop_header_branch
    %21 = sbr.rel (%p19) target = $region8
  $region5: #{encoder4_forward.1} parent=0 // loop_body
    %s23 = ssub.s32 %s18, 1
    %s24 = ssub.s32 %s18, 2
    %s25 = sadd.s32 %s18, 1
    %s26 = ssub.s32 %s18, %s25
    %p27 = scmp.eq.s32.totalorder %s26, 0
    %s29 = sadd.s32 %s28, 1
    %s30 = scalar_select %p27, %s28, %s29
    %p33 = pneg %p27
    %p34 = scmp.eq.s32.totalorder %s18, 1
    %p35 = por %p33, %p34
    %p36 = scmp.ne.s32.totalorder %s28, %s31
    %p37 = scmp.eq.s32.totalorder %s18, 0
    %p38 = por %p36, %p37
    %p39 = scmp.ne.s32.totalorder %s28, %s31
    %p40 = scmp.eq.s32.totalorder %s23, 1
    %p41 = por %p39, %p40
    %p42 = scmp.ne.s32.totalorder %s31, %s32
    %p43 = scmp.eq.s32.totalorder %s23, 0
    %p44 = por %p42, %p43
    %p45 = scmp.ne.s32.totalorder %s31, %s32
    %p46 = scmp.eq.s32.totalorder %s24, 1
    %p47 = por %p45, %p46
    %p49 = scmp.ne.s32.totalorder %s32, %s48
    %p50 = scmp.eq.s32.totalorder %s24, 0
    %p51 = por %p49, %p50
    %s53 = sadd.s32 %s52, 1
    %p56 = scmp.eq.s32.totalorder %s18, 1
    %p57 = scmp.ne.s32.totalorder %s52, %s54
    %p58 = scmp.eq.s32.totalorder %s18, 0
    %p59 = por %p57, %p58
    %p60 = scmp.ne.s32.totalorder %s52, %s54
    %p61 = scmp.eq.s32.totalorder %s23, 1
    %p62 = por %p60, %p61
    %p63 = scmp.ne.s32.totalorder %s54, %s55
    %p64 = scmp.eq.s32.totalorder %s23, 0
    %p65 = por %p63, %p64
    %p66 = scmp.ne.s32.totalorder %s54, %s55
    %p67 = scmp.eq.s32.totalorder %s24, 1
    %p68 = por %p66, %p67
    %p70 = scmp.ne.s32.totalorder %s55, %s69
    %p71 = scmp.eq.s32.totalorder %s24, 0
    %p72 = por %p70, %p71
    %s74 = sadd.s32 %s73, 1
    %p77 = scmp.eq.s32.totalorder %s18, 1
    %p78 = scmp.ne.s32.totalorder %s73, %s75
    %p79 = scmp.eq.s32.totalorder %s18, 0
    %p80 = por %p78, %p79
    %p81 = scmp.ne.s32.totalorder %s73, %s75
    %p82 = scmp.eq.s32.totalorder %s23, 1
    %p83 = por %p81, %p82
    %p84 = scmp.ne.s32.totalorder %s75, %s76
    %p85 = scmp.eq.s32.totalorder %s23, 0
    %p86 = por %p84, %p85
    %p87 = scmp.ne.s32.totalorder %s75, %s76
    %p88 = scmp.eq.s32.totalorder %s24, 1
    %p89 = por %p87, %p88
    %p91 = scmp.ne.s32.totalorder %s76, %s90
    %p92 = scmp.eq.s32.totalorder %s24, 0
    %p93 = por %p91, %p92
    %s95 = sadd.s32 %s94, 1
    %p98 = scmp.eq.s32.totalorder %s18, 1
    %p99 = scmp.ne.s32.totalorder %s94, %s96
    %p100 = scmp.eq.s32.totalorder %s18, 0
    %p101 = por %p99, %p100
    %p102 = scmp.ne.s32.totalorder %s94, %s96
    %p103 = scmp.eq.s32.totalorder %s23, 1
    %p104 = por %p102, %p103
    %p105 = scmp.ne.s32.totalorder %s96, %s97
    %p106 = scmp.eq.s32.totalorder %s23, 0
    %p107 = por %p105, %p106
    %p108 = scmp.ne.s32.totalorder %s96, %s97
    %p109 = scmp.eq.s32.totalorder %s24, 1
    %p110 = por %p108, %p109
    %p112 = scmp.ne.s32.totalorder %s97, %s111
    %p113 = scmp.eq.s32.totalorder %s24, 0
    %p114 = por %p112, %p113
    %s116 = sadd.s32 %s115, 1
    %p119 = scmp.eq.s32.totalorder %s18, 1
    %p120 = scmp.ne.s32.totalorder %s115, %s117
    %p121 = scmp.eq.s32.totalorder %s18, 0
    %p122 = por %p120, %p121
    %p123 = scmp.ne.s32.totalorder %s115, %s117
    %p124 = scmp.eq.s32.totalorder %s23, 1
    %p125 = por %p123, %p124
    %p126 = scmp.ne.s32.totalorder %s117, %s118
    %p127 = scmp.eq.s32.totalorder %s23, 0
    %p128 = por %p126, %p127
    %p129 = scmp.ne.s32.totalorder %s117, %s118
    %p130 = scmp.eq.s32.totalorder %s24, 1
    %p131 = por %p129, %p130
    %p133 = scmp.ne.s32.totalorder %s118, %s132
    %p134 = scmp.eq.s32.totalorder %s24, 0
    %p135 = por %p133, %p134
    %s137 = sadd.s32 %s136, 1
    %p140 = scmp.eq.s32.totalorder %s18, 1
    %p141 = scmp.ne.s32.totalorder %s136, %s138
    %p142 = scmp.eq.s32.totalorder %s18, 0
    %p143 = por %p141, %p142
    %p144 = scmp.ne.s32.totalorder %s136, %s138
    %p145 = scmp.eq.s32.totalorder %s23, 1
    %p146 = por %p144, %p145
    %p147 = scmp.ne.s32.totalorder %s138, %s139
    %p148 = scmp.eq.s32.totalorder %s23, 0
    %p149 = por %p147, %p148
    %p150 = scmp.ne.s32.totalorder %s138, %s139
    %p151 = scmp.eq.s32.totalorder %s24, 1
    %p152 = por %p150, %p151
    %p154 = scmp.ne.s32.totalorder %s139, %s153
    %p155 = scmp.eq.s32.totalorder %s24, 0
    %p156 = por %p154, %p155
    %s158 = sadd.s32 %s157, 1
    %p161 = scmp.eq.s32.totalorder %s18, 1
    %p162 = scmp.ne.s32.totalorder %s157, %s159
    %p163 = scmp.eq.s32.totalorder %s18, 0
    %p164 = por %p162, %p163
    %p165 = scmp.ne.s32.totalorder %s157, %s159
    %p166 = scmp.eq.s32.totalorder %s23, 1
    %p167 = por %p165, %p166
    %p168 = scmp.ne.s32.totalorder %s159, %s160
    %p169 = scmp.eq.s32.totalorder %s23, 0
    %p170 = por %p168, %p169
    %p171 = scmp.ne.s32.totalorder %s159, %s160
    %p172 = scmp.eq.s32.totalorder %s24, 1
    %p173 = por %p171, %p172
    %p175 = scmp.ne.s32.totalorder %s160, %s174
    %p176 = scmp.eq.s32.totalorder %s24, 0
    %p177 = por %p175, %p176
    %s179 = sadd.s32 %s178, 1
    %p182 = scmp.eq.s32.totalorder %s18, 1
    %p183 = scmp.ne.s32.totalorder %s178, %s180
    %p184 = scmp.eq.s32.totalorder %s18, 0
    %p185 = por %p183, %p184
    %p186 = scmp.ne.s32.totalorder %s178, %s180
    %p187 = scmp.eq.s32.totalorder %s23, 1
    %p188 = por %p186, %p187
    %p189 = scmp.ne.s32.totalorder %s180, %s181
    %p190 = scmp.eq.s32.totalorder %s23, 0
    %p191 = por %p189, %p190
    %p192 = scmp.ne.s32.totalorder %s180, %s181
    %p193 = scmp.eq.s32.totalorder %s24, 1
    %p194 = por %p192, %p193
    %p196 = scmp.ne.s32.totalorder %s181, %s195
    %p197 = scmp.eq.s32.totalorder %s24, 0
    %p198 = por %p196, %p197
    %s200 = sadd.s32 %s199, 1
    %p203 = scmp.eq.s32.totalorder %s18, 1
    %p204 = scmp.ne.s32.totalorder %s199, %s201
    %p205 = scmp.eq.s32.totalorder %s18, 0
    %p206 = por %p204, %p205
    %p207 = scmp.ne.s32.totalorder %s199, %s201
    %p208 = scmp.eq.s32.totalorder %s23, 1
    %p209 = por %p207, %p208
    %p210 = scmp.ne.s32.totalorder %s201, %s202
    %p211 = scmp.eq.s32.totalorder %s23, 0
    %p212 = por %p210, %p211
    %p213 = scmp.ne.s32.totalorder %s201, %s202
    %p214 = scmp.eq.s32.totalorder %s24, 1
    %p215 = por %p213, %p214
    %p217 = scmp.ne.s32.totalorder %s202, %s216
    %p218 = scmp.eq.s32.totalorder %s24, 0
    %p219 = por %p217, %p218
    %s221 = sadd.s32 %s220, 1
    %p224 = scmp.eq.s32.totalorder %s18, 1
    %p225 = scmp.ne.s32.totalorder %s220, %s222
    %p226 = scmp.eq.s32.totalorder %s18, 0
    %p227 = por %p225, %p226
    %p228 = scmp.ne.s32.totalorder %s220, %s222
    %p229 = scmp.eq.s32.totalorder %s23, 1
    %p230 = por %p228, %p229
    %p231 = scmp.ne.s32.totalorder %s222, %s223
    %p232 = scmp.eq.s32.totalorder %s23, 0
    %p233 = por %p231, %p232
    %p234 = scmp.ne.s32.totalorder %s222, %s223
    %p235 = scmp.eq.s32.totalorder %s24, 1
    %p236 = por %p234, %p235
    %p238 = scmp.ne.s32.totalorder %s223, %s237
    %p239 = scmp.eq.s32.totalorder %s24, 0
    %p240 = por %p238, %p239
    %s242 = sadd.s32 %s241, 1
    %p245 = scmp.eq.s32.totalorder %s18, 1
    %p246 = scmp.ne.s32.totalorder %s241, %s243
    %p247 = scmp.eq.s32.totalorder %s18, 0
    %p248 = por %p246, %p247
    %p249 = scmp.ne.s32.totalorder %s241, %s243
    %p250 = scmp.eq.s32.totalorder %s23, 1
    %p251 = por %p249, %p250
    %p252 = scmp.ne.s32.totalorder %s243, %s244
    %p253 = scmp.eq.s32.totalorder %s23, 0
    %p254 = por %p252, %p253
    %p255 = scmp.ne.s32.totalorder %s243, %s244
    %p256 = scmp.eq.s32.totalorder %s24, 1
    %p257 = por %p255, %p256
    %p259 = scmp.ne.s32.totalorder %s244, %s258
    %p260 = scmp.eq.s32.totalorder %s24, 0
    %p261 = por %p259, %p260
    %s263 = sadd.s32 %s262, 1
    %p266 = scmp.eq.s32.totalorder %s18, 1
    %p267 = scmp.ne.s32.totalorder %s262, %s264
    %p268 = scmp.eq.s32.totalorder %s18, 0
    %p269 = por %p267, %p268
    %p270 = scmp.ne.s32.totalorder %s262, %s264
    %p271 = scmp.eq.s32.totalorder %s23, 1
    %p272 = por %p270, %p271
    %p273 = scmp.ne.s32.totalorder %s264, %s265
    %p274 = scmp.eq.s32.totalorder %s23, 0
    %p275 = por %p273, %p274
    %p276 = scmp.ne.s32.totalorder %s264, %s265
    %p277 = scmp.eq.s32.totalorder %s24, 1
    %p278 = por %p276, %p277
    %p280 = scmp.ne.s32.totalorder %s265, %s279
    %p281 = scmp.eq.s32.totalorder %s24, 0
    %p282 = por %p280, %p281
    %s283 = ssub.s32 %s18, %s25
    %p284 = scmp.eq.s32.totalorder %s283, 0
    %s286 = sadd.s32 %s285, 1
    %s287 = scalar_select %p284, %s285, %s286
    %p290 = pneg %p284
    %p291 = scmp.eq.s32.totalorder %s18, 1
    %p292 = por %p290, %p291
    %p293 = scmp.ne.s32.totalorder %s285, %s288
    %p294 = scmp.eq.s32.totalorder %s18, 0
    %p295 = por %p293, %p294
    %p296 = scmp.ne.s32.totalorder %s285, %s288
    %p297 = scmp.eq.s32.totalorder %s23, 1
    %p298 = por %p296, %p297
    %p299 = scmp.ne.s32.totalorder %s288, %s289
    %p300 = scmp.eq.s32.totalorder %s23, 0
    %p301 = por %p299, %p300
    %p302 = scmp.ne.s32.totalorder %s288, %s289
    %p303 = scmp.eq.s32.totalorder %s24, 1
    %p304 = por %p302, %p303
    %p306 = scmp.ne.s32.totalorder %s289, %s305
    %p307 = scmp.eq.s32.totalorder %s24, 0
    %p308 = por %p306, %p307
    %p309 = scmp.le.s32.totalorder 1, %s18
    %p310 = scmp.lt.s32.totalorder %s18, 3
    %p311 = pnand %p309, %p310
    %p312 = pneg %p311
    // Predicated region
    $region9: #{encoder4_forward.1} parent=5 // pred_check
      _
    $region10: #{encoder4_forward.1} parent=5 // pred_check_branch
      %314 = sbr.rel (%p311) target = $region12
    $region11: #{encoder4_forward.1} parent=5 // pred_region
      %s315 = ssub.s32 %s18, 1
      // Predicated region
      $region13: #{encoder4_forward.1} parent=11 // pred_check
        %p316 = pneg %p65
      $region14: #{encoder4_forward.1} parent=11 // pred_check_branch
        %318 = sbr.rel (%p316) target = $region16
      $region15: #{encoder4_forward.1} parent=11 // pred_region
        _
      $region16: #{encoder4_forward.1} parent=11 // pred_fallthru
        _
      // Predicated region
      $region17: #{encoder4_forward.1} parent=11 // pred_check
        %p319 = pneg %p86
      $region18: #{encoder4_forward.1} parent=11 // pred_check_branch
        %321 = sbr.rel (%p319) target = $region20
      $region19: #{encoder4_forward.1} parent=11 // pred_region
        _
      $region20: #{encoder4_forward.1} parent=11 // pred_fallthru
        _
      // Predicated region
      $region21: #{encoder4_forward.1} parent=11 // pred_check
        %p322 = pneg %p107
      $region22: #{encoder4_forward.1} parent=11 // pred_check_branch
        %324 = sbr.rel (%p322) target = $region24
      $region23: #{encoder4_forward.1} parent=11 // pred_region
        _
      $region24: #{encoder4_forward.1} parent=11 // pred_fallthru
        _
      // Predicated region
      $region25: #{encoder4_forward.1} parent=11 // pred_check
        %p325 = pneg %p128
      $region26: #{encoder4_forward.1} parent=11 // pred_check_branch
        %327 = sbr.rel (%p325) target = $region28
      $region27: #{encoder4_forward.1} parent=11 // pred_region
        _
      $region28: #{encoder4_forward.1} parent=11 // pred_fallthru
        _
      // Predicated region
      $region29: #{encoder4_forward.1} parent=11 // pred_check
        %p328 = pneg %p149
      $region30: #{encoder4_forward.1} parent=11 // pred_check_branch
        %330 = sbr.rel (%p328) target = $region32
      $region31: #{encoder4_forward.1} parent=11 // pred_region
        _
      $region32: #{encoder4_forward.1} parent=11 // pred_fallthru
        _
      // Predicated region
      $region33: #{encoder4_forward.1} parent=11 // pred_check
        %p331 = pneg %p170
      $region34: #{encoder4_forward.1} parent=11 // pred_check_branch
        %333 = sbr.rel (%p331) target = $region36
      $region35: #{encoder4_forward.1} parent=11 // pred_region
        _
      $region36: #{encoder4_forward.1} parent=11 // pred_fallthru
        _
      // Predicated region
      $region37: #{encoder4_forward.1} parent=11 // pred_check
        %p334 = pneg %p191
      $region38: #{encoder4_forward.1} parent=11 // pred_check_branch
        %336 = sbr.rel (%p334) target = $region40
      $region39: #{encoder4_forward.1} parent=11 // pred_region
        _
      $region40: #{encoder4_forward.1} parent=11 // pred_fallthru
        _
      // Predicated region
      $region41: #{encoder4_forward.1} parent=11 // pred_check
        %p337 = pneg %p212
      $region42: #{encoder4_forward.1} parent=11 // pred_check_branch
        %339 = sbr.rel (%p337) target = $region44
      $region43: #{encoder4_forward.1} parent=11 // pred_region
        _
      $region44: #{encoder4_forward.1} parent=11 // pred_fallthru
        _
      // Predicated region
      $region45: #{encoder4_forward.1} parent=11 // pred_check
        %p340 = pneg %p233
      $region46: #{encoder4_forward.1} parent=11 // pred_check_branch
        %342 = sbr.rel (%p340) target = $region48
      $region47: #{encoder4_forward.1} parent=11 // pred_region
        _
      $region48: #{encoder4_forward.1} parent=11 // pred_fallthru
        _
      // Predicated region
      $region49: #{encoder4_forward.1} parent=11 // pred_check
        %p343 = pneg %p254
      $region50: #{encoder4_forward.1} parent=11 // pred_check_branch
        %345 = sbr.rel (%p343) target = $region52
      $region51: #{encoder4_forward.1} parent=11 // pred_region
        _
      $region52: #{encoder4_forward.1} parent=11 // pred_fallthru
        _
      // Predicated region
      $region53: #{encoder4_forward.1} parent=11 // pred_check
        %p346 = pneg %p275
      $region54: #{encoder4_forward.1} parent=11 // pred_check_branch
        %348 = sbr.rel (%p346) target = $region56
      $region55: #{encoder4_forward.1} parent=11 // pred_region
        _
      $region56: #{encoder4_forward.1} parent=11 // pred_fallthru
        _
    $region12: #{encoder4_forward.1} parent=5 // pred_fallthru
      _
    %p349 = scmp.lt.s32.totalorder %s18, 2
    // Predicated region
    $region57: #{encoder4_forward.1} parent=5 // pred_check
      %p350 = pneg %p349
    $region58: #{encoder4_forward.1} parent=5 // pred_check_branch
      %352 = sbr.rel (%p350) target = $region60
    $region59: #{encoder4_forward.1} parent=5 // pred_region
      // Predicated region
      $region61: #{encoder4_forward.1} parent=59 // pred_check
        %p353 = pneg %p38
      $region62: #{encoder4_forward.1} parent=59 // pred_check_branch
        %355 = sbr.rel (%p353) target = $region64
      $region63: #{encoder4_forward.1} parent=59 // pred_region
        %s356 = smul.u32 4, %s18
        %p357 = scmp.lt.s32.totalorder %s356, 7
        %s358 = scalar_select %p357, %s356, 7
        %s359 = smul.addr %s358, 7
        %s360 = smul.addr %s359, 8
        %s361 = scalar_lea.vmem %s0, %s360
        %s362 = smul.u32 4, %s18
      $region64: #{encoder4_forward.1} parent=59 // pred_fallthru
        _
    $region60: #{encoder4_forward.1} parent=5 // pred_fallthru
      _
    %p363 = scmp.le.s32.totalorder 1, %s18
    %p364 = scmp.lt.s32.totalorder %s18, 3
    %p365 = pnand %p363, %p364
    %p366 = pneg %p365
    // Predicated region
    $region65: #{encoder4_forward.1} parent=5 // pred_check
      _
    $region66: #{encoder4_forward.1} parent=5 // pred_check_branch
      %368 = sbr.rel (%p365) target = $region68
    $region67: #{encoder4_forward.1} parent=5 // pred_region
      %s369 = ssub.s32 %s18, 1
      %s370 = smul.u32 4, %s23
      %p371 = scmp.lt.s32.totalorder %s370, 7
      %s372 = scalar_select %p371, %s370, 7
      %s373 = smul.addr %s372, 7
      %s374 = smul.addr %s373, 8
      %s375 = scalar_lea.vmem %s0, %s374
      %p376 = pneg %p44
      %p377 = pneg %p41
      %p378 = pneg %p65
      %p379 = pneg %p62
      %p380 = pneg %p86
      %p381 = pneg %p83
      %p382 = pneg %p107
      %p383 = pneg %p104
      %p384 = pneg %p128
      %p385 = pneg %p125
      %p386 = pneg %p149
      %p387 = pneg %p146
      %p388 = pneg %p170
      %p389 = pneg %p167
      %p390 = pneg %p191
      %p391 = pneg %p188
      %p392 = pneg %p212
      %p393 = pneg %p209
      %p394 = pneg %p233
      %p395 = pneg %p230
      %p396 = pneg %p254
      %p397 = pneg %p251
      %p398 = pneg %p275
      %p399 = pneg %p272
      %p400 = pneg %p301
      %p401 = pneg %p298
      %s402 = smul.u32 4, %s23
      %p403 = scmp.lt.s32.totalorder %s402, 7
      %s404 = scalar_select %p403, %s402, 7
      %s405 = smul.addr %s404, 8
      %s406 = scalar_lea.vmem %s12, %s405
      %s407 = smul.u32 4, %s23
      %p408 = scmp.lt.s32.totalorder %s407, 7
      %s409 = scalar_select %p408, %s407, 7
      %s410 = smul.addr %s409, 7
      %s411 = smul.addr %s410, 8
      %s412 = scalar_lea.vmem %s0, %s411
      %s413 = smul.u32 4, %s23
      %s414 = smul.u32 4, %s23
      %p415 = scmp.lt.s32.totalorder %s414, 7
      %s416 = scalar_select %p415, %s414, 7
      %s417 = smul.addr %s416, 8
      %s418 = scalar_lea.vmem %s12, %s417
      %s419 = smul.u32 4, %s23
      %v421 = vld [vmem:[%s412] sm:$0xff]
      %v422 = vld [vmem:[%s412 + $0x8] sm:$0xff]
      %v423 = vld [vmem:[%s412 + $0x10] sm:$0xff]
      %v424 = vld [vmem:[%s412 + $0x18] sm:$0xff]
      %v425 = vld [vmem:[%s412 + $0x20] sm:$0xff]
      %v426 = vld [vmem:[%s412 + $0x28] sm:$0xff]
      %v427 = vld [vmem:[%s412 + $0x30] sm:$0xff]
      %v428 = vld [vmem:[%s412 + $0x38] sm:$0xff]
      %v429 = vld [vmem:[%s412 + $0x40] sm:$0xff]
      %v430 = vld [vmem:[%s412 + $0x48] sm:$0xff]
      %v431 = vld [vmem:[%s412 + $0x50] sm:$0xff]
      %v432 = vld [vmem:[%s412 + $0x58] sm:$0xff]
      %v433 = vld [vmem:[%s412 + $0x60] sm:$0xff]
      %v434 = vld [vmem:[%s412 + $0x68] sm:$0xff]
      %v435 = vld [vmem:[%s412 + $0x70] sm:$0xff]
      %v436 = vld [vmem:[%s412 + $0x78] sm:$0xff]
      %v437 = vld [vmem:[%s412 + $0x80] sm:$0xff]
      %v438 = vld [vmem:[%s412 + $0x88] sm:$0xff]
      %v439 = vld [vmem:[%s412 + $0x90] sm:$0xff]
      %v440 = vld [vmem:[%s412 + $0x98] sm:$0xff]
      %v441 = vld [vmem:[%s412 + $0xa0] sm:$0xff]
      %v442 = vld [vmem:[%s412 + $0xa8] sm:$0xff]
      %v443 = vld [vmem:[%s412 + $0xb0] sm:$0xff]
      %v444 = vld [vmem:[%s412 + $0xb8] sm:$0xff]
      %v445 = vld [vmem:[%s412 + $0xc0] sm:$0xff]
      %v446 = vld [vmem:[%s412 + $0xc8] sm:$0xff]
      %v447 = vld [vmem:[%s412 + $0xd0] sm:$0xff]
      %v448 = vld [vmem:[%s412 + $0xd8] sm:$0xff]
      %v449 = vpack.c.bf16 %v428, %v421
      %v450 = vpack.c.bf16 %v429, %v422
      %v451 = vpack.c.bf16 %v430, %v423
      %v452 = vpack.c.bf16 %v431, %v424
      %v453 = vpack.c.bf16 %v432, %v425
      %v454 = vpack.c.bf16 %v433, %v426
      %v455 = vpack.c.bf16 %v434, %v427
      %v456 = vpack.c.bf16 %v442, %v435
      %v457 = vpack.c.bf16 %v443, %v436
      %v458 = vpack.c.bf16 %v444, %v437
      %v459 = vpack.c.bf16 %v445, %v438
      %v460 = vpack.c.bf16 %v446, %v439
      %v461 = vpack.c.bf16 %v447, %v440
      %v462 = vpack.c.bf16 %v448, %v441
      %v463 = vld [vmem:[%s1] sm:$0xf]
      %v464 = vld [vmem:[%s1 + $0x4] sm:$0xf]
      %v465 = vld [vmem:[%s1 + $0x8] sm:$0xf]
      %v466 = vld [vmem:[%s1 + $0xc] sm:$0xf]
      %v467 = vld [vmem:[%s1 + $0x10] sm:$0xf]
      %v468 = vld [vmem:[%s1 + $0x14] sm:$0xf]
      %v469 = vld [vmem:[%s1 + $0x18] sm:$0xf]
      %v470 = vld [vmem:[%s1 + $0x1c] sm:$0xf]
      %v471 = vld [vmem:[%s1 + $0x20] sm:$0xf]
      %v472 = vld [vmem:[%s1 + $0x24] sm:$0xf]
      %v473 = vld [vmem:[%s1 + $0x28] sm:$0xf]
      %v474 = vld [vmem:[%s1 + $0x2c] sm:$0xf]
      %v475 = vld [vmem:[%s1 + $0x30] sm:$0xf]
      %v476 = vld [vmem:[%s1 + $0x34] sm:$0xf]
      %v477 = vld [vmem:[%s1 + $0x38] sm:$0xf]
      %v478 = vld [vmem:[%s1 + $0x3c] sm:$0xf]
      %v479 = vld [vmem:[%s1 + $0x40] sm:$0xf]
      %v480 = vld [vmem:[%s1 + $0x44] sm:$0xf]
      %v481 = vld [vmem:[%s1 + $0x48] sm:$0xf]
      %v482 = vld [vmem:[%s1 + $0x4c] sm:$0xf]
      %v483 = vld [vmem:[%s1 + $0x50] sm:$0xf]
      %v484 = vld [vmem:[%s1 + $0x54] sm:$0xf]
      %v485 = vld [vmem:[%s1 + $0x58] sm:$0xf]
      %v486 = vld [vmem:[%s1 + $0x5c] sm:$0xf]
      %v487 = vld [vmem:[%s1 + $0x60] sm:$0xf]
      %v488 = vld [vmem:[%s1 + $0x64] sm:$0xf]
      %v489 = vld [vmem:[%s1 + $0x68] sm:$0xf]
      %v490 = vld [vmem:[%s1 + $0x6c] sm:$0xf]
      %v491 = vld [vmem:[%s1 + $0x70] sm:$0xf]
      %v492 = vld [vmem:[%s1 + $0x74] sm:$0xf]
      %v493 = vld [vmem:[%s1 + $0x78] sm:$0xf]
      %v494 = vld [vmem:[%s1 + $0x7c] sm:$0xf]
      %v495 = vld [vmem:[%s1 + $0x80] sm:$0xf]
      %v496 = vld [vmem:[%s1 + $0x84] sm:$0xf]
      %v497 = vld [vmem:[%s1 + $0x88] sm:$0xf]
      %v498 = vld [vmem:[%s1 + $0x8c] sm:$0xf]
      %v499 = vld [vmem:[%s1 + $0x90] sm:$0xf]
      %v500 = vld [vmem:[%s1 + $0x94] sm:$0xf]
      %v501 = vld [vmem:[%s1 + $0x98] sm:$0xf]
      %v502 = vld [vmem:[%s1 + $0x9c] sm:$0xf]
      %v503 = vld [vmem:[%s1 + $0xa0] sm:$0xf]
      %v504 = vld [vmem:[%s1 + $0xa4] sm:$0xf]
      %v505 = vld [vmem:[%s1 + $0xa8] sm:$0xf]
      %v506 = vld [vmem:[%s1 + $0xac] sm:$0xf]
      %v507 = vld [vmem:[%s1 + $0xb0] sm:$0xf]
      %v508 = vld [vmem:[%s1 + $0xb4] sm:$0xf]
      %v509 = vld [vmem:[%s1 + $0xb8] sm:$0xf]
      %v510 = vld [vmem:[%s1 + $0xbc] sm:$0xf]
      %v511 = vld [vmem:[%s1 + $0xc0] sm:$0xf]
      %v512 = vld [vmem:[%s1 + $0xc4] sm:$0xf]
      %v513 = vld [vmem:[%s1 + $0xc8] sm:$0xf]
      %v514 = vld [vmem:[%s1 + $0xcc] sm:$0xf]
      %v515 = vld [vmem:[%s1 + $0xd0] sm:$0xf]
      %v516 = vld [vmem:[%s1 + $0xd4] sm:$0xf]
      %v517 = vld [vmem:[%s1 + $0xd8] sm:$0xf]
      %v518 = vld [vmem:[%s1 + $0xdc] sm:$0xf]
      %v519 = vld [vmem:[%s1 + $0xe0] sm:$0xf]
      %v520 = vld [vmem:[%s1 + $0xe4] sm:$0xf]
      %v521 = vld [vmem:[%s1 + $0xe8] sm:$0xf]
      %v522 = vld [vmem:[%s1 + $0xec] sm:$0xf]
      %v523 = vld [vmem:[%s1 + $0xf0] sm:$0xf]
      %v524 = vld [vmem:[%s1 + $0xf4] sm:$0xf]
      %v525 = vld [vmem:[%s1 + $0xf8] sm:$0xf]
      %v526 = vld [vmem:[%s1 + $0xfc] sm:$0xf]
      %v527 = vld [vmem:[%s1 + $0x100] sm:$0xf]
      %v528 = vld [vmem:[%s1 + $0x104] sm:$0xf]
      %v529 = vld [vmem:[%s1 + $0x108] sm:$0xf]
      %v530 = vld [vmem:[%s1 + $0x10c] sm:$0xf]
      %v531 = vld [vmem:[%s1 + $0x110] sm:$0xf]
      %v532 = vld [vmem:[%s1 + $0x114] sm:$0xf]
      %v533 = vld [vmem:[%s1 + $0x118] sm:$0xf]
      %v534 = vld [vmem:[%s1 + $0x11c] sm:$0xf]
      %v535 = vld [vmem:[%s1 + $0x120] sm:$0xf]
      %v536 = vld [vmem:[%s1 + $0x124] sm:$0xf]
      %v537 = vld [vmem:[%s1 + $0x128] sm:$0xf]
      %v538 = vld [vmem:[%s1 + $0x12c] sm:$0xf]
      %v539 = vld [vmem:[%s1 + $0x130] sm:$0xf]
      %v540 = vld [vmem:[%s1 + $0x134] sm:$0xf]
      %v541 = vld [vmem:[%s1 + $0x138] sm:$0xf]
      %v542 = vld [vmem:[%s1 + $0x13c] sm:$0xf]
      %v543 = vld [vmem:[%s1 + $0x140] sm:$0xf]
      %v544 = vld [vmem:[%s1 + $0x144] sm:$0xf]
      %v545 = vld [vmem:[%s1 + $0x148] sm:$0xf]
      %v546 = vld [vmem:[%s1 + $0x14c] sm:$0xf]
      %v547 = vld [vmem:[%s1 + $0x150] sm:$0xf]
      %v548 = vld [vmem:[%s1 + $0x154] sm:$0xf]
      %v549 = vld [vmem:[%s1 + $0x158] sm:$0xf]
      %v550 = vld [vmem:[%s1 + $0x15c] sm:$0xf]
      %v551 = vld [vmem:[%s1 + $0x160] sm:$0xf]
      %v552 = vld [vmem:[%s1 + $0x164] sm:$0xf]
      %v553 = vld [vmem:[%s1 + $0x168] sm:$0xf]
      %v554 = vld [vmem:[%s1 + $0x16c] sm:$0xf]
      %v555 = vld [vmem:[%s1 + $0x170] sm:$0xf]
      %v556 = vld [vmem:[%s1 + $0x174] sm:$0xf]
      %v557 = vld [vmem:[%s1 + $0x178] sm:$0xf]
      %v558 = vld [vmem:[%s1 + $0x17c] sm:$0xf]
      %v559 = vld [vmem:[%s1 + $0x180] sm:$0xf]
      %v560 = vld [vmem:[%s1 + $0x184] sm:$0xf]
      %v561 = vld [vmem:[%s2] sm:$0x1]
      %v563 = vlaneseq
      %v564 = vshrl.u32 %v563, 7
      %v565 = vsub.s32 0, %v564
      %v566 = vrot.slane %v561, %v565
      %v666 = vunpack.c.l.b16 %v463
      %v667 = vunpack.c.l.b16 %v464
      %v668 = vunpack.c.l.b16 %v465
      %v669 = vunpack.c.l.b16 %v466
      %v670 = vunpack.c.l.b16 %v467
      %v671 = vunpack.c.l.b16 %v468
      %v672 = vunpack.c.l.b16 %v469
      %v673 = vunpack.c.l.b16 %v470
      %v674 = vunpack.c.l.b16 %v471
      %v675 = vunpack.c.l.b16 %v472
      %v676 = vunpack.c.l.b16 %v473
      %v677 = vunpack.c.l.b16 %v474
      %v678 = vunpack.c.l.b16 %v475
      %v679 = vunpack.c.l.b16 %v476
      %v680 = vunpack.c.l.b16 %v477
      %v681 = vunpack.c.l.b16 %v478
      %v682 = vunpack.c.l.b16 %v479
      %v683 = vunpack.c.l.b16 %v480
      %v684 = vunpack.c.l.b16 %v481
      %v685 = vunpack.c.l.b16 %v482
      %v686 = vunpack.c.l.b16 %v483
      %v687 = vunpack.c.l.b16 %v484
      %v688 = vunpack.c.l.b16 %v485
      %v689 = vunpack.c.l.b16 %v486
      %v690 = vunpack.c.l.b16 %v487
      %v691 = vunpack.c.l.b16 %v488
      %v692 = vunpack.c.l.b16 %v489
      %v693 = vunpack.c.l.b16 %v490
      %v694 = vunpack.c.l.b16 %v491
      %v695 = vunpack.c.l.b16 %v492
      %v696 = vunpack.c.l.b16 %v493
      %v697 = vunpack.c.l.b16 %v494
      %v698 = vunpack.c.l.b16 %v495
      %v699 = vunpack.c.l.b16 %v496
      %v700 = vunpack.c.l.b16 %v497
      %v701 = vunpack.c.l.b16 %v498
      %v702 = vunpack.c.l.b16 %v499
      %v703 = vunpack.c.l.b16 %v500
      %v704 = vunpack.c.l.b16 %v501
      %v705 = vunpack.c.l.b16 %v502
      %v706 = vunpack.c.l.b16 %v503
      %v707 = vunpack.c.l.b16 %v504
      %v708 = vunpack.c.l.b16 %v505
      %v709 = vunpack.c.l.b16 %v506
      %v710 = vunpack.c.l.b16 %v507
      %v711 = vunpack.c.l.b16 %v508
      %v712 = vunpack.c.l.b16 %v509
      %v713 = vunpack.c.l.b16 %v510
      %v714 = vunpack.c.l.b16 %v511
      %v715 = vunpack.c.l.b16 %v512
      %v716 = vunpack.c.l.b16 %v513
      %v717 = vunpack.c.l.b16 %v514
      %v718 = vunpack.c.l.b16 %v515
      %v719 = vunpack.c.l.b16 %v516
      %v720 = vunpack.c.l.b16 %v517
      %v721 = vunpack.c.l.b16 %v518
      %v722 = vunpack.c.l.b16 %v519
      %v723 = vunpack.c.l.b16 %v520
      %v724 = vunpack.c.l.b16 %v521
      %v725 = vunpack.c.l.b16 %v522
      %v726 = vunpack.c.l.b16 %v523
      %v727 = vunpack.c.l.b16 %v524
      %v728 = vunpack.c.l.b16 %v525
      %v729 = vunpack.c.l.b16 %v526
      %v730 = vunpack.c.l.b16 %v527
      %v731 = vunpack.c.l.b16 %v528
      %v732 = vunpack.c.l.b16 %v529
      %v733 = vunpack.c.l.b16 %v530
      %v734 = vunpack.c.l.b16 %v531
      %v735 = vunpack.c.l.b16 %v532
      %v736 = vunpack.c.l.b16 %v533
      %v737 = vunpack.c.l.b16 %v534
      %v738 = vunpack.c.l.b16 %v535
      %v739 = vunpack.c.l.b16 %v536
      %v740 = vunpack.c.l.b16 %v537
      %v741 = vunpack.c.l.b16 %v538
      %v742 = vunpack.c.l.b16 %v539
      %v743 = vunpack.c.l.b16 %v540
      %v744 = vunpack.c.l.b16 %v541
      %v745 = vunpack.c.l.b16 %v542
      %v746 = vunpack.c.l.b16 %v543
      %v747 = vunpack.c.l.b16 %v544
      %v748 = vunpack.c.l.b16 %v545
      %v749 = vunpack.c.l.b16 %v546
      %v750 = vunpack.c.l.b16 %v547
      %v751 = vunpack.c.l.b16 %v548
      %v752 = vunpack.c.l.b16 %v549
      %v753 = vunpack.c.l.b16 %v550
      %v754 = vunpack.c.l.b16 %v551
      %v755 = vunpack.c.l.b16 %v552
      %v756 = vunpack.c.l.b16 %v553
      %v757 = vunpack.c.l.b16 %v554
      %v758 = vunpack.c.l.b16 %v555
      %v759 = vunpack.c.l.b16 %v556
      %v760 = vunpack.c.l.b16 %v557
      %v761 = vunpack.c.l.b16 %v558
      %v762 = vunpack.c.l.b16 %v559
      %v763 = vunpack.c.l.b16 %v560
      %v764 = vpack.c.b16 %v667, %v666
      %v765 = vpack.c.b16 %v669, %v668
      %v766 = vpack.c.b16 %v671, %v670
      %v767 = vpack.c.b16 %v673, %v672
      %v768 = vpack.c.b16 %v675, %v674
      %v769 = vpack.c.b16 %v677, %v676
      %v770 = vpack.c.b16 %v679, %v678
      %v771 = vpack.c.b16 %v681, %v680
      %v772 = vpack.c.b16 %v683, %v682
      %v773 = vpack.c.b16 %v685, %v684
      %v774 = vpack.c.b16 %v687, %v686
      %v775 = vpack.c.b16 %v689, %v688
      %v776 = vpack.c.b16 %v691, %v690
      %v777 = vpack.c.b16 %v693, %v692
      %v778 = vpack.c.b16 %v695, %v694
      %v779 = vpack.c.b16 %v697, %v696
      %v780 = vpack.c.b16 %v699, %v698
      %v781 = vpack.c.b16 %v701, %v700
      %v782 = vpack.c.b16 %v703, %v702
      %v783 = vpack.c.b16 %v705, %v704
      %v784 = vpack.c.b16 %v707, %v706
      %v785 = vpack.c.b16 %v709, %v708
      %v786 = vpack.c.b16 %v711, %v710
      %v787 = vpack.c.b16 %v713, %v712
      %v788 = vpack.c.b16 %v715, %v714
      %v789 = vpack.c.b16 %v717, %v716
      %v790 = vpack.c.b16 %v719, %v718
      %v791 = vpack.c.b16 %v721, %v720
      %v792 = vpack.c.b16 %v723, %v722
      %v793 = vpack.c.b16 %v725, %v724
      %v794 = vpack.c.b16 %v727, %v726
      %v795 = vpack.c.b16 %v729, %v728
      %v796 = vpack.c.b16 %v731, %v730
      %v797 = vpack.c.b16 %v733, %v732
      %v798 = vpack.c.b16 %v735, %v734
      %v799 = vpack.c.b16 %v737, %v736
      %v800 = vpack.c.b16 %v739, %v738
      %v801 = vpack.c.b16 %v741, %v740
      %v802 = vpack.c.b16 %v743, %v742
      %v803 = vpack.c.b16 %v745, %v744
      %v804 = vpack.c.b16 %v747, %v746
      %v805 = vpack.c.b16 %v749, %v748
      %v806 = vpack.c.b16 %v751, %v750
      %v807 = vpack.c.b16 %v753, %v752
      %v808 = vpack.c.b16 %v755, %v754
      %v809 = vpack.c.b16 %v757, %v756
      %v810 = vpack.c.b16 %v759, %v758
      %v811 = vpack.c.b16 %v761, %v760
      %v812 = vpack.c.b16 %v763, %v762
      %vm862 = vcmask 130048
      %v864 = vsel %vm862, %v455, 0
      %v867 = vsel %vm862, %v462, 0
      %869 = vmatprep.subr.bf16.mxu0 0
      %870 = vmatpush1.bf16.msra.mxu0 %v764
      %871 = vmatprep.subr.bf16.mxu0 0
      %872 = vmatpush1.bf16.msra.mxu0 %v765
      %873 = vmatprep.subr.bf16.mxu0 0
      %874 = vmatpush1.bf16.msra.mxu0 %v766
      %875 = vmatprep.subr.bf16.mxu0 0
      %876 = vmatpush1.bf16.msra.mxu0 %v767
      %877 = vmatprep.subr.bf16.mxu0 0
      %878 = vmatpush1.bf16.msra.mxu0 %v768
      %879 = vmatprep.subr.bf16.mxu0 0
      %880 = vmatpush1.bf16.msra.mxu0 %v769
      %881 = vmatprep.subr.bf16.mxu0 0
      %882 = vmatpush1.bf16.msra.mxu0 %v770
      %883 = vmatprep.subr.bf16.mxu0 0
      %884 = vmatpush1.bf16.msra.mxu0 %v771
      %885 = vmatprep.subr.bf16.mxu0 0
      %886 = vmatpush1.bf16.msra.mxu0 %v772
      %887 = vmatprep.subr.bf16.mxu0 0
      %888 = vmatpush1.bf16.msra.mxu0 %v773
      %889 = vmatprep.subr.bf16.mxu0 0
      %890 = vmatpush1.bf16.msra.mxu0 %v774
      %891 = vmatprep.subr.bf16.mxu0 0
      %892 = vmatpush1.bf16.msra.mxu0 %v775
      %893 = vmatprep.subr.bf16.mxu0 0
      %894 = vmatpush1.bf16.msra.mxu0 %v776
      %895 = vmatprep.subr.bf16.mxu0 0
      %896 = vmatpush1.bf16.msra.mxu0 %v777
      %897 = vmatprep.subr.bf16.mxu0 0
      %898 = vmatpush1.bf16.msra.mxu0 %v778
      %899 = vmatprep.subr.bf16.mxu0 0
      %900 = vmatpush1.bf16.msra.mxu0 %v779
      %901 = vmatprep.mubr.bf16.mxu0 %v450
      %902 = vmatmul.mubr.bf16.gmra.mrb[0].mxu0 %v449
      %v903 = vpop.f32.mrb[0].mxu0
      %v904 = vadd.f32 %v566, %v903
      %v905 = vpop.f32.mrb[0].mxu0
      %v906 = vpop.f32.mrb[0].mxu0
      %v907 = vadd.f32 %v566, %v906
      %v908 = vpop.f32.mrb[0].mxu0
      %909 = vmatprep.mubr.bf16.mxu0 %v457
      %910 = vmatmul.mubr.bf16.gmra.mrb[0].mxu0 %v456
      %v911 = vpop.f32.mrb[0].mxu0
      %v912 = vadd.f32 %v566, %v911
      %v913 = vpop.f32.mrb[0].mxu0
      %v914 = vpop.f32.mrb[0].mxu0
      %v915 = vadd.f32 %v566, %v914
      %v916 = vpop.f32.mrb[0].mxu0
      %917 = vdwg.mxu0
      %918 = vmatprep.subr.bf16.mxu0 0
      %919 = vmatpush1.bf16.msra.mxu0 %v780
      %920 = vmatprep.subr.bf16.mxu0 0
      %921 = vmatpush1.bf16.msra.mxu0 %v781
      %922 = vmatprep.subr.bf16.mxu0 0
      %923 = vmatpush1.bf16.msra.mxu0 %v782
      %924 = vmatprep.subr.bf16.mxu0 0
      %925 = vmatpush1.bf16.msra.mxu0 %v783
      %926 = vmatprep.subr.bf16.mxu0 0
      %927 = vmatpush1.bf16.msra.mxu0 %v784
      %928 = vmatprep.subr.bf16.mxu0 0
      %929 = vmatpush1.bf16.msra.mxu0 %v785
      %930 = vmatprep.subr.bf16.mxu0 0
      %931 = vmatpush1.bf16.msra.mxu0 %v786
      %932 = vmatprep.subr.bf16.mxu0 0
      %933 = vmatpush1.bf16.msra.mxu0 %v787
      %934 = vmatprep.subr.bf16.mxu0 0
      %935 = vmatpush1.bf16.msra.mxu0 %v788
      %936 = vmatprep.subr.bf16.mxu0 0
      %937 = vmatpush1.bf16.msra.mxu0 %v789
      %938 = vmatprep.subr.bf16.mxu0 0
      %939 = vmatpush1.bf16.msra.mxu0 %v790
      %940 = vmatprep.subr.bf16.mxu0 0
      %941 = vmatpush1.bf16.msra.mxu0 %v791
      %942 = vmatprep.subr.bf16.mxu0 0
      %943 = vmatpush1.bf16.msra.mxu0 %v792
      %944 = vmatprep.subr.bf16.mxu0 0
      %945 = vmatpush1.bf16.msra.mxu0 %v793
      %946 = vmatprep.subr.bf16.mxu0 0
      %947 = vmatpush1.bf16.msra.mxu0 %v794
      %948 = vmatprep.subr.bf16.mxu0 0
      %949 = vmatpush1.bf16.msra.mxu0 %v795
      %950 = vmatprep.mubr.bf16.mxu0 %v452
      %951 = vmatmul.mubr.bf16.gmra.mrb[0].mxu0 %v451
      %v952 = vpop.f32.mrb[0].mxu0
      %v953 = vadd.f32 %v904, %v952
      %v954 = vpop.f32.mrb[0].mxu0
      %v955 = vpop.f32.mrb[0].mxu0
      %v956 = vadd.f32 %v907, %v955
      %v957 = vpop.f32.mrb[0].mxu0
      %958 = vmatprep.mubr.bf16.mxu0 %v459
      %959 = vmatmul.mubr.bf16.gmra.mrb[0].mxu0 %v458
      %v960 = vpop.f32.mrb[0].mxu0
      %v961 = vadd.f32 %v912, %v960
      %v962 = vpop.f32.mrb[0].mxu0
      %v963 = vpop.f32.mrb[0].mxu0
      %v964 = vadd.f32 %v915, %v963
      %v965 = vpop.f32.mrb[0].mxu0
      %966 = vdwg.mxu0
      %967 = vmatprep.subr.bf16.mxu0 0
      %968 = vmatpush1.bf16.msra.mxu0 %v796
      %969 = vmatprep.subr.bf16.mxu0 0
      %970 = vmatpush1.bf16.msra.mxu0 %v797
      %971 = vmatprep.subr.bf16.mxu0 0
      %972 = vmatpush1.bf16.msra.mxu0 %v798
      %973 = vmatprep.subr.bf16.mxu0 0
      %974 = vmatpush1.bf16.msra.mxu0 %v799
      %975 = vmatprep.subr.bf16.mxu0 0
      %976 = vmatpush1.bf16.msra.mxu0 %v800
      %977 = vmatprep.subr.bf16.mxu0 0
      %978 = vmatpush1.bf16.msra.mxu0 %v801
      %979 = vmatprep.subr.bf16.mxu0 0
      %980 = vmatpush1.bf16.msra.mxu0 %v802
      %981 = vmatprep.subr.bf16.mxu0 0
      %982 = vmatpush1.bf16.msra.mxu0 %v803
      %983 = vmatprep.subr.bf16.mxu0 0
      %984 = vmatpush1.bf16.msra.mxu0 %v804
      %985 = vmatprep.subr.bf16.mxu0 0
      %986 = vmatpush1.bf16.msra.mxu0 %v805
      %987 = vmatprep.subr.bf16.mxu0 0
      %988 = vmatpush1.bf16.msra.mxu0 %v806
      %989 = vmatprep.subr.bf16.mxu0 0
      %990 = vmatpush1.bf16.msra.mxu0 %v807
      %991 = vmatprep.subr.bf16.mxu0 0
      %992 = vmatpush1.bf16.msra.mxu0 %v808
      %993 = vmatprep.subr.bf16.mxu0 0
      %994 = vmatpush1.bf16.msra.mxu0 %v809
      %995 = vmatprep.subr.bf16.mxu0 0
      %996 = vmatpush1.bf16.msra.mxu0 %v810
      %997 = vmatprep.subr.bf16.mxu0 0
      %998 = vmatpush1.bf16.msra.mxu0 %v811
      %999 = vmatprep.mubr.bf16.mxu0 %v454
      %1000 = vmatmul.mubr.bf16.gmra.mrb[0].mxu0 %v453
      %v1001 = vpop.f32.mrb[0].mxu0
      %v1002 = vadd.f32 %v953, %v1001
      %v1003 = vpop.f32.mrb[0].mxu0
      %v1004 = vpop.f32.mrb[0].mxu0
      %v1005 = vadd.f32 %v956, %v1004
      %v1006 = vpop.f32.mrb[0].mxu0
      %1007 = vmatprep.mubr.bf16.mxu0 %v461
      %1008 = vmatmul.mubr.bf16.gmra.mrb[0].mxu0 %v460
      %v1009 = vpop.f32.mrb[0].mxu0
      %v1010 = vadd.f32 %v961, %v1009
      %v1011 = vpop.f32.mrb[0].mxu0
      %v1012 = vpop.f32.mrb[0].mxu0
      %v1013 = vadd.f32 %v964, %v1012
      %v1014 = vpop.f32.mrb[0].mxu0
      %1015 = vdwg.mxu0
      %1016 = vmatprep.subr.bf16.mxu0 0
      %1017 = vmatpush1.bf16.msra.mxu0 %v812
      %1018 = vmatprep.subr.bf16.mxu0 0
      %1019 = vmatpush1.bf16.msra.mxu0 0
      %1020 = vmatprep.subr.bf16.mxu0 0
      %1021 = vmatpush1.bf16.msra.mxu0 0
      %1022 = vmatprep.subr.bf16.mxu0 0
      %1023 = vmatpush1.bf16.msra.mxu0 0
      %1024 = vmatprep.subr.bf16.mxu0 0
      %1025 = vmatpush1.bf16.msra.mxu0 0
      %1026 = vmatprep.subr.bf16.mxu0 0
      %1027 = vmatpush1.bf16.msra.mxu0 0
      %1028 = vmatprep.subr.bf16.mxu0 0
      %1029 = vmatpush1.bf16.msra.mxu0 0
      %1030 = vmatprep.subr.bf16.mxu0 0
      %1031 = vmatpush1.bf16.msra.mxu0 0
      %1032 = vmatprep.subr.bf16.mxu0 0
      %1033 = vmatpush1.bf16.msra.mxu0 0
      %1034 = vmatprep.subr.bf16.mxu0 0
      %1035 = vmatpush1.bf16.msra.mxu0 0
      %1036 = vmatprep.subr.bf16.mxu0 0
      %1037 = vmatpush1.bf16.msra.mxu0 0
      %1038 = vmatprep.subr.bf16.mxu0 0
      %1039 = vmatpush1.bf16.msra.mxu0 0
      %1040 = vmatprep.subr.bf16.mxu0 0
      %1041 = vmatpush1.bf16.msra.mxu0 0
      %1042 = vmatprep.subr.bf16.mxu0 0
      %1043 = vmatpush1.bf16.msra.mxu0 0
      %1044 = vmatprep.subr.bf16.mxu0 0
      %1045 = vmatpush1.bf16.msra.mxu0 0
      %1046 = vmatprep.subr.bf16.mxu0 0
      %1047 = vmatpush1.bf16.msra.mxu0 0
      %1048 = vmatprep.mubr.bf16.mxu0 0
      %1049 = vmatmul.mubr.bf16.gmra.mrb[0].mxu0 %v864
      %v1050 = vpop.f32.mrb[0].mxu0
      %v1051 = vadd.f32 %v1002, %v1050
      %v1052 = vpop.f32.mrb[0].mxu0
      %v1053 = vpop.f32.mrb[0].mxu0
      %v1054 = vadd.f32 %v1005, %v1053
      %v1055 = vpop.f32.mrb[0].mxu0
      %1056 = vmatprep.mubr.bf16.mxu0 0
      %1057 = vmatmul.mubr.bf16.gmra.mrb[0].mxu0 %v867
      %v1058 = vpop.f32.mrb[0].mxu0
      %v1059 = vadd.f32 %v1010, %v1058
      %v1060 = vpop.f32.mrb[0].mxu0
      %v1061 = vpop.f32.mrb[0].mxu0
      %v1062 = vadd.f32 %v1013, %v1061
      %v1063 = vpop.f32.mrb[0].mxu0
      %1064 = vdwg.mxu0
      %v1065 = vmax.f32 %v1051, 0.0
      %v1066 = vmax.f32 %v1054, 0.0
      %v1067 = vmax.f32 %v1059, 0.0
      %v1068 = vmax.f32 %v1062, 0.0
      %v1069 = vpack.c.bf16 %v1066, %v1065
      %v1070 = vpack.c.bf16 %v1068, %v1067
      %v1071 = vld [vmem:[%s3] sm:$0xf]
      %v1072 = vld [vmem:[%s3 + $0x4] sm:$0xf]
      %v1073 = vld [vmem:[%s3 + $0x8] sm:$0xf]
      %v1074 = vld [vmem:[%s3 + $0xc] sm:$0xf]
      %v1075 = vld [vmem:[%s4] sm:$0x1]
      %v1077 = vlaneseq
      %v1078 = vshrl.u32 %v1077, 7
      %v1079 = vsub.s32 0, %v1078
      %v1080 = vrot.slane %v1075, %v1079
      %v1086 = vunpack.c.l.b16 %v1071
      %v1087 = vunpack.c.l.b16 %v1072
      %v1088 = vunpack.c.l.b16 %v1073
      %v1089 = vunpack.c.l.b16 %v1074
      %v1090 = vpack.c.b16 %v1087, %v1086
      %v1091 = vpack.c.b16 %v1089, %v1088
      %vm1094 = vcmask 261120
      %v1096 = vsel %vm1094, %v1069, 0
      %v1099 = vsel %vm1094, %v1070, 0
      %1101 = vmatprep.subr.bf16.mxu0 0
      %1102 = vmatpush1.bf16.msra.mxu0 %v1090
      %1103 = vmatprep.subr.bf16.mxu0 0
      %1104 = vmatpush1.bf16.msra.mxu0 %v1091
      %1105 = vmatprep.subr.bf16.mxu0 0
      %1106 = vmatpush1.bf16.msra.mxu0 0
      %1107 = vmatprep.subr.bf16.mxu0 0
      %1108 = vmatpush1.bf16.msra.mxu0 0
      %1109 = vmatprep.subr.bf16.mxu0 0
      %1110 = vmatpush1.bf16.msra.mxu0 0
      %1111 = vmatprep.subr.bf16.mxu0 0
      %1112 = vmatpush1.bf16.msra.mxu0 0
      %1113 = vmatprep.subr.bf16.mxu0 0
      %1114 = vmatpush1.bf16.msra.mxu0 0
      %1115 = vmatprep.subr.bf16.mxu0 0
      %1116 = vmatpush1.bf16.msra.mxu0 0
      %1117 = vmatprep.subr.bf16.mxu0 0
      %1118 = vmatpush1.bf16.msra.mxu0 0
      %1119 = vmatprep.subr.bf16.mxu0 0
      %1120 = vmatpush1.bf16.msra.mxu0 0
      %1121 = vmatprep.subr.bf16.mxu0 0
      %1122 = vmatpush1.bf16.msra.mxu0 0
      %1123 = vmatprep.subr.bf16.mxu0 0
      %1124 = vmatpush1.bf16.msra.mxu0 0
      %1125 = vmatprep.subr.bf16.mxu0 0
      %1126 = vmatpush1.bf16.msra.mxu0 0
      %1127 = vmatprep.subr.bf16.mxu0 0
      %1128 = vmatpush1.bf16.msra.mxu0 0
      %1129 = vmatprep.subr.bf16.mxu0 0
      %1130 = vmatpush1.bf16.msra.mxu0 0
      %1131 = vmatprep.subr.bf16.mxu0 0
      %1132 = vmatpush1.bf16.msra.mxu0 0
      %1133 = vmatprep.mubr.bf16.mxu0 0
      %1134 = vmatmul.mubr.bf16.gmra.mrb[0].mxu0 %v1096
      %v1135 = vpop.f32.mrb[0].mxu0
      %v1136 = vadd.f32 %v1080, %v1135
      %v1137 = vpop.f32.mrb[0].mxu0
      %v1138 = vpop.f32.mrb[0].mxu0
      %v1139 = vadd.f32 %v1080, %v1138
      %v1140 = vpop.f32.mrb[0].mxu0
      %1141 = vmatprep.mubr.bf16.mxu0 0
      %1142 = vmatmul.mubr.bf16.gmra.mrb[0].mxu0 %v1099
      %v1143 = vpop.f32.mrb[0].mxu0
      %v1144 = vadd.f32 %v1080, %v1143
      %v1145 = vpop.f32.mrb[0].mxu0
      %v1146 = vpop.f32.mrb[0].mxu0
      %v1147 = vadd.f32 %v1080, %v1146
      %v1148 = vpop.f32.mrb[0].mxu0
      %1149 = vdwg.mxu0
      %v1150 = vmax.f32 %v1136, 0.0
      %v1151 = vmax.f32 %v1139, 0.0
      %v1152 = vmax.f32 %v1144, 0.0
      %v1153 = vmax.f32 %v1147, 0.0
      %v1154 = vpack.c.bf16 %v1151, %v1150
      %v1155 = vpack.c.bf16 %v1153, %v1152
      %v1156 = vld [vmem:[%s5] sm:$0xf]
      %v1157 = vld [vmem:[%s5 + $0x4] sm:$0xf]
      %v1158 = vld [vmem:[%s5 + $0x8] sm:$0xf]
      %v1159 = vld [vmem:[%s5 + $0xc] sm:$0xf]
      %v1160 = vld [vmem:[%s6] sm:$0x1]
      %v1162 = vlaneseq
      %v1163 = vshrl.u32 %v1162, 7
      %v1164 = vsub.s32 0, %v1163
      %v1165 = vrot.slane %v1160, %v1164
      %v1171 = vunpack.c.l.b16 %v1156
      %v1172 = vunpack.c.l.b16 %v1157
      %v1173 = vunpack.c.l.b16 %v1158
      %v1174 = vunpack.c.l.b16 %v1159
      %v1175 = vpack.c.b16 %v1172, %v1171
      %v1176 = vpack.c.b16 %v1174, %v1173
      %v1180 = vsel %vm1094, %v1154, 0
      %v1183 = vsel %vm1094, %v1155, 0
      %1185 = vmatprep.subr.bf16.mxu0 0
      %1186 = vmatpush1.bf16.msra.mxu0 %v1175
      %1187 = vmatprep.subr.bf16.mxu0 0
      %1188 = vmatpush1.bf16.msra.mxu0 %v1176
      %1189 = vmatprep.subr.bf16.mxu0 0
      %1190 = vmatpush1.bf16.msra.mxu0 0
      %1191 = vmatprep.subr.bf16.mxu0 0
      %1192 = vmatpush1.bf16.msra.mxu0 0
      %1193 = vmatprep.subr.bf16.mxu0 0
      %1194 = vmatpush1.bf16.msra.mxu0 0
      %1195 = vmatprep.subr.bf16.mxu0 0
      %1196 = vmatpush1.bf16.msra.mxu0 0
      %1197 = vmatprep.subr.bf16.mxu0 0
      %1198 = vmatpush1.bf16.msra.mxu0 0
      %1199 = vmatprep.subr.bf16.mxu0 0
      %1200 = vmatpush1.bf16.msra.mxu0 0
      %1201 = vmatprep.subr.bf16.mxu0 0
      %1202 = vmatpush1.bf16.msra.mxu0 0
      %1203 = vmatprep.subr.bf16.mxu0 0
      %1204 = vmatpush1.bf16.msra.mxu0 0
      %1205 = vmatprep.subr.bf16.mxu0 0
      %1206 = vmatpush1.bf16.msra.mxu0 0
      %1207 = vmatprep.subr.bf16.mxu0 0
      %1208 = vmatpush1.bf16.msra.mxu0 0
      %1209 = vmatprep.subr.bf16.mxu0 0
      %1210 = vmatpush1.bf16.msra.mxu0 0
      %1211 = vmatprep.subr.bf16.mxu0 0
      %1212 = vmatpush1.bf16.msra.mxu0 0
      %1213 = vmatprep.subr.bf16.mxu0 0
      %1214 = vmatpush1.bf16.msra.mxu0 0
      %1215 = vmatprep.subr.bf16.mxu0 0
      %1216 = vmatpush1.bf16.msra.mxu0 0
      %1217 = vmatprep.mubr.bf16.mxu0 0
      %1218 = vmatmul.mubr.bf16.gmra.mrb[0].mxu0 %v1180
      %v1219 = vpop.f32.mrb[0].mxu0
      %v1220 = vadd.f32 %v1165, %v1219
      %v1221 = vpop.f32.mrb[0].mxu0
      %v1222 = vpop.f32.mrb[0].mxu0
      %v1223 = vadd.f32 %v1165, %v1222
      %v1224 = vpop.f32.mrb[0].mxu0
      %1225 = vmatprep.mubr.bf16.mxu0 0
      %1226 = vmatmul.mubr.bf16.gmra.mrb[0].mxu0 %v1183
      %v1227 = vpop.f32.mrb[0].mxu0
      %v1228 = vadd.f32 %v1165, %v1227
      %v1229 = vpop.f32.mrb[0].mxu0
      %v1230 = vpop.f32.mrb[0].mxu0
      %v1231 = vadd.f32 %v1165, %v1230
      %v1232 = vpop.f32.mrb[0].mxu0
      %1233 = vdwg.mxu0
      %v1234 = vmax.f32 %v1220, 0.0
      %v1235 = vmax.f32 %v1223, 0.0
      %v1236 = vmax.f32 %v1228, 0.0
      %v1237 = vmax.f32 %v1231, 0.0
      %v1238 = vpack.c.bf16 %v1235, %v1234
      %v1239 = vpack.c.bf16 %v1237, %v1236
      %v1240 = vld [vmem:[%s7] sm:$0xf]
      %v1241 = vld [vmem:[%s7 + $0x4] sm:$0xf]
      %v1242 = vld [vmem:[%s7 + $0x8] sm:$0xf]
      %v1243 = vld [vmem:[%s7 + $0xc] sm:$0xf]
      %v1244 = vld [vmem:[%s8] sm:$0x1]
      %v1246 = vlaneseq
      %v1247 = vshrl.u32 %v1246, 7
      %v1248 = vsub.s32 0, %v1247
      %v1249 = vrot.slane %v1244, %v1248
      %v1255 = vunpack.c.l.b16 %v1240
      %v1256 = vunpack.c.l.b16 %v1241
      %v1257 = vunpack.c.l.b16 %v1242
      %v1258 = vunpack.c.l.b16 %v1243
      %v1259 = vpack.c.b16 %v1256, %v1255
      %v1260 = vpack.c.b16 %v1258, %v1257
      %v1264 = vsel %vm1094, %v1238, 0
      %v1267 = vsel %vm1094, %v1239, 0
      %1269 = vmatprep.subr.bf16.mxu0 0
      %1270 = vmatpush1.bf16.msra.mxu0 %v1259
      %1271 = vmatprep.subr.bf16.mxu0 0
      %1272 = vmatpush1.bf16.msra.mxu0 %v1260
      %1273 = vmatprep.subr.bf16.mxu0 0
      %1274 = vmatpush1.bf16.msra.mxu0 0
      %1275 = vmatprep.subr.bf16.mxu0 0
      %1276 = vmatpush1.bf16.msra.mxu0 0
      %1277 = vmatprep.subr.bf16.mxu0 0
      %1278 = vmatpush1.bf16.msra.mxu0 0
      %1279 = vmatprep.subr.bf16.mxu0 0
      %1280 = vmatpush1.bf16.msra.mxu0 0
      %1281 = vmatprep.subr.bf16.mxu0 0
      %1282 = vmatpush1.bf16.msra.mxu0 0
      %1283 = vmatprep.subr.bf16.mxu0 0
      %1284 = vmatpush1.bf16.msra.mxu0 0
      %1285 = vmatprep.subr.bf16.mxu0 0
      %1286 = vmatpush1.bf16.msra.mxu0 0
      %1287 = vmatprep.subr.bf16.mxu0 0
      %1288 = vmatpush1.bf16.msra.mxu0 0
      %1289 = vmatprep.subr.bf16.mxu0 0
      %1290 = vmatpush1.bf16.msra.mxu0 0
      %1291 = vmatprep.subr.bf16.mxu0 0
      %1292 = vmatpush1.bf16.msra.mxu0 0
      %1293 = vmatprep.subr.bf16.mxu0 0
      %1294 = vmatpush1.bf16.msra.mxu0 0
      %1295 = vmatprep.subr.bf16.mxu0 0
      %1296 = vmatpush1.bf16.msra.mxu0 0
      %1297 = vmatprep.subr.bf16.mxu0 0
      %1298 = vmatpush1.bf16.msra.mxu0 0
      %1299 = vmatprep.subr.bf16.mxu0 0
      %1300 = vmatpush1.bf16.msra.mxu0 0
      %1301 = vmatprep.mubr.bf16.mxu0 0
      %1302 = vmatmul.mubr.bf16.gmra.mrb[0].mxu0 %v1264
      %v1303 = vpop.f32.mrb[0].mxu0
      %v1304 = vadd.f32 %v1249, %v1303
      %v1305 = vpop.f32.mrb[0].mxu0
      %v1306 = vpop.f32.mrb[0].mxu0
      %v1307 = vadd.f32 %v1249, %v1306
      %v1308 = vpop.f32.mrb[0].mxu0
      %1309 = vmatprep.mubr.bf16.mxu0 0
      %1310 = vmatmul.mubr.bf16.gmra.mrb[0].mxu0 %v1267
      %v1311 = vpop.f32.mrb[0].mxu0
      %v1312 = vadd.f32 %v1249, %v1311
      %v1313 = vpop.f32.mrb[0].mxu0
      %v1314 = vpop.f32.mrb[0].mxu0
      %v1315 = vadd.f32 %v1249, %v1314
      %v1316 = vpop.f32.mrb[0].mxu0
      %1317 = vdwg.mxu0
      %v1318 = vmax.f32 %v1304, 0.0
      %v1319 = vmax.f32 %v1307, 0.0
      %v1320 = vmax.f32 %v1312, 0.0
      %v1321 = vmax.f32 %v1315, 0.0
      %v1322 = vpack.c.bf16 %v1319, %v1318
      %v1323 = vpack.c.bf16 %v1321, %v1320
      %v1324 = vld [vmem:[%s9] sm:$0xf]
      %v1325 = vld [vmem:[%s9 + $0x4] sm:$0xf]
      %v1326 = vld [vmem:[%s9 + $0x8] sm:$0xf]
      %v1327 = vld [vmem:[%s9 + $0xc] sm:$0xf]
      %v1328 = vld [vmem:[%s10] sm:$0x1]
      %v1330 = vlaneseq
      %v1331 = vshrl.u32 %v1330, 7
      %v1332 = vsub.s32 0, %v1331
      %v1333 = vrot.slane %v1328, %v1332
      %v1339 = vunpack.c.l.b16 %v1324
      %v1340 = vunpack.c.l.b16 %v1325
      %v1341 = vunpack.c.l.b16 %v1326
      %v1342 = vunpack.c.l.b16 %v1327
      %v1343 = vpack.c.b16 %v1340, %v1339
      %v1344 = vpack.c.b16 %v1342, %v1341
      %v1348 = vsel %vm1094, %v1322, 0
      %v1351 = vsel %vm1094, %v1323, 0
      %1353 = vmatprep.subr.bf16.mxu0 0
      %1354 = vmatpush1.bf16.msra.mxu0 %v1343
      %1355 = vmatprep.subr.bf16.mxu0 0
      %1356 = vmatpush1.bf16.msra.mxu0 %v1344
      %1357 = vmatprep.subr.bf16.mxu0 0
      %1358 = vmatpush1.bf16.msra.mxu0 0
      %1359 = vmatprep.subr.bf16.mxu0 0
      %1360 = vmatpush1.bf16.msra.mxu0 0
      %1361 = vmatprep.subr.bf16.mxu0 0
      %1362 = vmatpush1.bf16.msra.mxu0 0
      %1363 = vmatprep.subr.bf16.mxu0 0
      %1364 = vmatpush1.bf16.msra.mxu0 0
      %1365 = vmatprep.subr.bf16.mxu0 0
      %1366 = vmatpush1.bf16.msra.mxu0 0
      %1367 = vmatprep.subr.bf16.mxu0 0
      %1368 = vmatpush1.bf16.msra.mxu0 0
      %1369 = vmatprep.subr.bf16.mxu0 0
      %1370 = vmatpush1.bf16.msra.mxu0 0
      %1371 = vmatprep.subr.bf16.mxu0 0
      %1372 = vmatpush1.bf16.msra.mxu0 0
      %1373 = vmatprep.subr.bf16.mxu0 0
      %1374 = vmatpush1.bf16.msra.mxu0 0
      %1375 = vmatprep.subr.bf16.mxu0 0
      %1376 = vmatpush1.bf16.msra.mxu0 0
      %1377 = vmatprep.subr.bf16.mxu0 0
      %1378 = vmatpush1.bf16.msra.mxu0 0
      %1379 = vmatprep.subr.bf16.mxu0 0
      %1380 = vmatpush1.bf16.msra.mxu0 0
      %1381 = vmatprep.subr.bf16.mxu0 0
      %1382 = vmatpush1.bf16.msra.mxu0 0
      %1383 = vmatprep.subr.bf16.mxu0 0
      %1384 = vmatpush1.bf16.msra.mxu0 0
      %1385 = vmatprep.mubr.bf16.mxu0 0
      %1386 = vmatmul.mubr.bf16.gmra.mrb[0].mxu0 %v1348
      %v1387 = vpop.f32.mrb[0].mxu0
      %v1388 = vadd.f32 %v1333, %v1387
      %v1389 = vpop.f32.mrb[0].mxu0
      %v1390 = vpop.f32.mrb[0].mxu0
      %v1391 = vadd.f32 %v1333, %v1390
      %v1392 = vpop.f32.mrb[0].mxu0
      %1393 = vmatprep.mubr.bf16.mxu0 0
      %1394 = vmatmul.mubr.bf16.gmra.mrb[0].mxu0 %v1351
      %v1395 = vpop.f32.mrb[0].mxu0
      %v1396 = vadd.f32 %v1333, %v1395
      %v1397 = vpop.f32.mrb[0].mxu0
      %v1398 = vpop.f32.mrb[0].mxu0
      %v1399 = vadd.f32 %v1333, %v1398
      %v1400 = vpop.f32.mrb[0].mxu0
      %1401 = vdwg.mxu0
      %v1402 = vld [vmem:[%s11] sm:$0x1]
      %v1403 = vmul.f32 %v1388, 0.5
      %v1404 = vmul.f32 %v1391, 0.5
      %v1405 = vmul.f32 %v1396, 0.5
      %v1406 = vmul.f32 %v1399, 0.5
      %v1407 = vmul.f32 %v1403, 1.442695
      %v1408 = vpow.pop %v1407
      %v1409 = vmul.f32 %v1404, 1.442695
      %v1410 = vpow.pop %v1409
      %v1411 = vmul.f32 %v1405, 1.442695
      %v1412 = vpow.pop %v1411
      %v1413 = vmul.f32 %v1406, 1.442695
      %v1414 = vpow.pop %v1413
      %v1416 = vlaneseq
      %v1417 = vshrl.u32 %v1416, 7
      %v1418 = vsub.s32 0, %v1417
      %v1419 = vrot.slane %v1402, %v1418
      %1425 = vrot.lane.b32.xlu0 %v1408, 112
      %v1426 = vpop.permute.xlu0 %1425
      %1427 = vrot.lane.b32.xlu0 %v1410, 112
      %v1428 = vpop.permute.xlu0 %1427
      %1429 = vrot.lane.b32.xlu0 %v1412, 112
      %v1430 = vpop.permute.xlu0 %1429
      %1431 = vrot.lane.b32.xlu0 %v1414, 112
      %v1432 = vpop.permute.xlu0 %1431
      %v1437 = vmul.f32 %v1419, %v1426
      %v1438 = vmul.f32 %v1419, %v1428
      %v1439 = vmul.f32 %v1419, %v1430
      %v1440 = vmul.f32 %v1419, %v1432
      %v1441 = vadd.f32 %v1437, %v1388
      %v1442 = vadd.f32 %v1438, %v1391
      %v1443 = vadd.f32 %v1439, %v1396
      %v1444 = vadd.f32 %v1440, %v1399
      %1445 = vst.msk [vmem:[%s418] sm:$0xff] %vm1094, %v1388
      %1446 = vst.msk [vmem:[%s418 + $0x8] sm:$0xff] %vm1094, %v1391
      %1447 = vst.msk [vmem:[%s418 + $0x10] sm:$0xff] %vm1094, %v1396
      %1448 = vst.msk [vmem:[%s418 + $0x18] sm:$0xff] %vm1094, %v1399
      %1453 = vrot.lane.b32.xlu0 %v1441, 32
      %v1454 = vpop.permute.xlu0 %1453
      %1455 = vrot.lane.b32.xlu0 %v1442, 32
      %v1456 = vpop.permute.xlu0 %1455
      %1457 = vrot.lane.b32.xlu0 %v1443, 32
      %v1458 = vpop.permute.xlu0 %1457
      %1459 = vrot.lane.b32.xlu0 %v1444, 32
      %v1460 = vpop.permute.xlu0 %1459
      %vm1465 = vcmask 392448
      %1466 = vst.msk [vmem:[%s418] sm:$0xff] %vm1465, %v1454
      %1467 = vst.msk [vmem:[%s418 + $0x8] sm:$0xff] %vm1465, %v1456
      %1468 = vst.msk [vmem:[%s418 + $0x10] sm:$0xff] %vm1465, %v1458
      %1469 = vst.msk [vmem:[%s418 + $0x18] sm:$0xff] %vm1465, %v1460
      %s1470 = smul.u32 4, %s23
      %p1471 = scmp.lt.s32.totalorder %s1470, 7
      %s1472 = scalar_select %p1471, %s1470, 7
      %s1473 = smul.addr %s1472, 8
      %s1474 = scalar_lea.vmem %s12, %s1473
      // Predicated region
      $region69: #{encoder4_forward.1} parent=67 // pred_check
        %p1475 = pneg %p298
      $region70: #{encoder4_forward.1} parent=67 // pred_check_branch
        %1477 = sbr.rel (%p1475) target = $region72
      $region71: #{encoder4_forward.1} parent=67 // pred_region
        %s1478 = smul.u32 4, %s23
      $region72: #{encoder4_forward.1} parent=67 // pred_fallthru
        _
    $region68: #{encoder4_forward.1} parent=5 // pred_fallthru
      _
    %p1479 = scmp.le.s32.totalorder 2, %s18
    // Predicated region
    $region73: #{encoder4_forward.1} parent=5 // pred_check
      %p1480 = pneg %p1479
    $region74: #{encoder4_forward.1} parent=5 // pred_check_branch
      %1482 = sbr.rel (%p1480) target = $region76
    $region75: #{encoder4_forward.1} parent=5 // pred_region
      %s1483 = ssub.s32 %s18, 2
      // Predicated region
      $region77: #{encoder4_forward.1} parent=75 // pred_check
        %p1484 = pneg %p304
      $region78: #{encoder4_forward.1} parent=75 // pred_check_branch
        %1486 = sbr.rel (%p1484) target = $region80
      $region79: #{encoder4_forward.1} parent=75 // pred_region
        %s1487 = smul.u32 4, %s24
        %p1488 = scmp.lt.s32.totalorder %s1487, 7
        %s1489 = scalar_select %p1488, %s1487, 7
        %s1490 = smul.addr %s1489, 8
        %s1491 = scalar_lea.vmem %s12, %s1490
      $region80: #{encoder4_forward.1} parent=75 // pred_fallthru
        _
    $region76: #{encoder4_forward.1} parent=5 // pred_fallthru
      _
  $region6: #{encoder4_forward.1} parent=0 // loop_footer
    %s22 = sadd.s32 1, %s18
  $region7: #{encoder4_forward.1} parent=0 // loop_footer_branch
    %17 = sbr.rel target = $region3
  $region8: #{encoder4_forward.1} parent=0 // loop_exit
    _

</llo_original>
